<compile_context>
chip_gen: v7x
topology: tpu7x:2x2x1
jax: 0.10.0
libtpu: 0.0.40
codegen_flags: <defaults>
</compile_context>

<pallas_src>
import functools

import jax
import jax.numpy as jnp
from jax.experimental import pallas as pl
from jax.experimental.pallas import tpu as pltpu

LAYERSIZE = 256
TILE_B_MAX = 1024  # max batch rows processed per grid step


def _device_kind():
    try:
        return jax.devices()[0].device_kind.lower()
    except Exception:  # pragma: no cover - defensive, keeps script runnable
        return ""


_IS_V5 = "v5" in _device_kind()
# bf16 epilogue only where the VPU has native bf16 (v6e / v7x).
_EPILOGUE_DTYPE = jnp.float32 if _IS_V5 else jnp.bfloat16
# Fuse layer-1 into one block-diagonal dot only while K=2*n_input still fits
# the MXU systolic depth (128 on v5e, 256 on v6e/v7x); beyond that the zero
# blocks would double the layer-1 MXU passes.
_L1_FUSE_MAX_K = 128 if _IS_V5 else 256


def _fuse_layer1(n_input):
    return 2 * n_input <= _L1_FUSE_MAX_K


def mlp_kernel(fused_l1, bf16_epilogue, n_input, *refs):
    bf16 = jnp.bfloat16
    f32 = jnp.float32
    ep = bf16 if bf16_epilogue else f32

    if fused_l1:
        (x_ref, w1_ref, b1_ref,
         w12_ref, b12_ref, w22_ref, b22_ref,
         w3t_ref, w3b_ref, b3_ref,
         w4_ref, b4_ref, w5_ref, b5_ref, out_ref) = refs
    else:
        (x_ref, w11_ref, b11_ref, w21_ref, b21_ref,
         w12_ref, b12_ref, w22_ref, b22_ref,
         w3t_ref, w3b_ref, b3_ref,
         w4_ref, b4_ref, w5_ref, b5_ref, out_ref) = refs

    def epilogue(acc_f32, b_ref):
        # bias-add + ReLU in `ep` (bf16 on v6e/v7x, f32 on v5e); result feeds
        # the next MXU dot, so return bf16.
        y = acc_f32.astype(ep) + b_ref[...]
        return jnp.maximum(y, 0.0).astype(bf16)

    x = x_ref[...].astype(bf16)

    if fused_l1:
        # Layer 1, both branches at once via the block-diagonal [2n, 512]
        # weight: one K=2n MXU pass instead of two K=n passes.
        h = epilogue(jnp.dot(x, w1_ref[...], preferred_element_type=f32), b1_ref)
        h1 = h[:, :LAYERSIZE]          # lane-aligned 256/256 split
        h2 = h[:, LAYERSIZE:]
    else:
        x1 = x[:, :n_input]
        x2 = x[:, n_input:]
        h1 = epilogue(jnp.dot(x1, w11_ref[...], preferred_element_type=f32), b11_ref)
        h2 = epilogue(jnp.dot(x2, w21_ref[...], preferred_element_type=f32), b21_ref)

    # Layer 2: two separate K=256 dots.
    y1 = epilogue(jnp.dot(h1, w12_ref[...], preferred_element_type=f32), b12_ref)
    y2 = epilogue(jnp.dot(h2, w22_ref[...], preferred_element_type=f32), b22_ref)

    # Layer 3 without the concat: split weight, sum the two partial products
    # straight into the f32 accumulator.
    acc3 = (jnp.dot(y1, w3t_ref[...], preferred_element_type=f32)
            + jnp.dot(y2, w3b_ref[...], preferred_element_type=f32))
    y3 = epilogue(acc3, b3_ref)                                    # [B, 512] bf16

    # Layer 4: epilogue stays f32 (feeds the VPU/XLU final layer, not the MXU).
    acc4 = jnp.dot(y3, w4_ref[...], preferred_element_type=f32)
    y4 = jnp.maximum(acc4 + b4_ref[...], 0.0)                      # [B, 256] f32

    # Final [256 -> 1] layer off the MXU: VPU broadcast-multiply + XLU reduce.
    w5 = w5_ref[...].astype(f32)                                   # [1, 256]
    out = jnp.sum(y4 * w5, axis=-1, keepdims=True) + b5_ref[0, 0]
    out_ref[...] = out.astype(out_ref.dtype)


def init_params(key, n_input):
    """Deterministic params mimicking PyTorch nn.Linear default init.

    Weights are [in, out]; biases are [1, out]; all float32."""
    layer_dims = [
        ("c1L1", n_input, LAYERSIZE),
        ("c2L1", n_input, LAYERSIZE),
        ("c1L2", LAYERSIZE, LAYERSIZE),
        ("c2L2", LAYERSIZE, LAYERSIZE),
        ("L3", 2 * LAYERSIZE, 2 * LAYERSIZE),
        ("L4", 2 * LAYERSIZE, LAYERSIZE),
        ("L5", LAYERSIZE, 1),
    ]
    params = {}
    for name, fan_in, fan_out in layer_dims:
        key, kw, kb = jax.random.split(key, 3)
        bound = 1.0 / (fan_in ** 0.5)
        w = jax.random.uniform(kw, (fan_in, fan_out), jnp.float32,
                               minval=-bound, maxval=bound)
        b = jax.random.uniform(kb, (1, fan_out), jnp.float32,
                               minval=-bound, maxval=bound)
        params[name] = (w, b)
    return params


def prepare_kernel_params(params, n_input):
    """Kernel-side params: bf16 weights, split W3, optionally fused layer 1."""
    bf16 = jnp.bfloat16
    ep = _EPILOGUE_DTYPE

    w11, b11 = params["c1L1"]
    w21, b21 = params["c2L1"]
    w3, b3 = params["L3"]
    w4, b4 = params["L4"]
    w5, b5 = params["L5"]

    kp = dict(
        w12=params["c1L2"][0].astype(bf16), b12=params["c1L2"][1].astype(ep),
        w22=params["c2L2"][0].astype(bf16), b22=params["c2L2"][1].astype(ep),
        # L3 weight split into top/bottom halves -> no in-kernel concat.
        w3t=w3[:LAYERSIZE, :].astype(bf16),
        w3b=w3[LAYERSIZE:, :].astype(bf16),
        b3=b3.astype(ep),
        w4=w4.astype(bf16), b4=b4,             # L4 epilogue stays f32
        w5_row=w5.T.astype(bf16),              # [1, 256]
        b5=b5,                                 # [1, 1] f32 (SMEM scalar)
    )
    if _fuse_layer1(n_input):
        zeros = jnp.zeros((n_input, LAYERSIZE), jnp.float32)
        w1 = jnp.concatenate(
            [jnp.concatenate([w11, zeros], axis=1),
             jnp.concatenate([zeros, w21], axis=1)], axis=0)        # [2n, 512]
        kp["w1"] = w1.astype(bf16)
        kp["b1"] = jnp.concatenate([b11, b21], axis=1).astype(ep)   # [1, 512]
    else:
        kp["w11"] = w11.astype(bf16)
        kp["b11"] = b11.astype(ep)
        kp["w21"] = w21.astype(bf16)
        kp["b21"] = b21.astype(ep)
    return kp


def _choose_tiling(B):
    """tile_b / padded batch: minimize padding, amortize per-step overhead,
    and give v7x's 2 TensorCores >= 2 grid steps whenever the batch can be
    split without extra padding (free on 1-TC chips)."""
    n_steps = pl.cdiv(B, TILE_B_MAX)
    if n_steps < 2 and B >= 16:
        n_steps = 2
    tile_b = ((pl.cdiv(B, n_steps) + 7) // 8) * 8
    b_pad = pl.cdiv(B, tile_b) * tile_b
    return tile_b, b_pad


@functools.partial(jax.jit, static_argnames=("n_input",))
def neural_network_forward(X, kp, *, n_input):
    """Pallas implementation of NeuralNetwork.forward.

    X: [B, 2 * n_input] float32.  Returns [B, 1] float32."""
    B = X.shape[0]
    assert X.shape[1] == 2 * n_input
    fused = _fuse_layer1(n_input)
    bf16_epilogue = _EPILOGUE_DTYPE == jnp.bfloat16

    tile_b, b_pad = _choose_tiling(B)
    if b_pad != B:
        X = jnp.pad(X, ((0, b_pad - B), (0, 0)))
    grid = (b_pad // tile_b,)

    def const_spec(arr):  # whole array, VMEM-resident across all grid steps
        return pl.BlockSpec(arr.shape, lambda i: (0, 0))

    if fused:
        weight_args = [kp["w1"], kp["b1"]]
    else:
        weight_args = [kp["w11"], kp["b11"], kp["w21"], kp["b21"]]
    weight_args += [kp["w12"], kp["b12"], kp["w22"], kp["b22"],
                    kp["w3t"], kp["w3b"], kp["b3"],
                    kp["w4"], kp["b4"], kp["w5_row"]]
    flat_args = [X] + weight_args + [kp["b5"]]

    in_specs = [pl.BlockSpec((tile_b, 2 * n_input), lambda i: (i, 0))]
    in_specs += [const_spec(a) for a in weight_args]
    in_specs += [pl.BlockSpec(memory_space=pltpu.MemorySpace.SMEM)]   # b5 scalar

    # Advisory cost estimate so XLA schedules surrounding ops around the call.
    macs_per_row = (2 * n_input * LAYERSIZE            # layer 1 (both branches)
                    + 2 * LAYERSIZE * LAYERSIZE        # layer 2 (both branches)
                    + (2 * LAYERSIZE) * (2 * LAYERSIZE)  # L3
                    + (2 * LAYERSIZE) * LAYERSIZE      # L4
                    + LAYERSIZE)                       # L5
    weight_bytes = sum(int(a.size) * a.dtype.itemsize for a in weight_args) + 4
    cost = pl.CostEstimate(
        flops=2 * int(b_pad) * macs_per_row,
        transcendentals=0,
        bytes_accessed=int(b_pad) * (2 * n_input * 4 + 4) + weight_bytes)

    kernel = functools.partial(mlp_kernel, fused, bf16_epilogue, n_input)

    out = pl.pallas_call(
        kernel,
        grid=grid,
        out_shape=jax.ShapeDtypeStruct((b_pad, 1), jnp.float32),
        in_specs=in_specs,
        out_specs=pl.BlockSpec((tile_b, 1), lambda i: (i, 0)),
        compiler_params=pltpu.CompilerParams(
            dimension_semantics=("parallel",),
            vmem_limit_bytes=32 * 1024 * 1024),
        cost_estimate=cost,
    )(*flat_args)
    return out[:B]


def reference_forward_f32(X, params, n_input):
    def lin(x, name):
        w, b = params[name]
        return x @ w + b
    y1 = jax.nn.relu(lin(X[:, :n_input], "c1L1"))
    y2 = jax.nn.relu(lin(X[:, n_input:], "c2L1"))
    y1 = jax.nn.relu(lin(y1, "c1L2"))
    y2 = jax.nn.relu(lin(y2, "c2L2"))
    y = jnp.concatenate([y1, y2], axis=1)
    y = jax.nn.relu(lin(y, "L3"))
    y = jax.nn.relu(lin(y, "L4"))
    return lin(y, "L5")


def reference_forward_matched(X, params, n_input):
    """Mirrors the kernel's numerics: bf16 dot inputs, f32 MXU accumulation,
    layer 1-3 epilogues in _EPILOGUE_DTYPE, layer 4 epilogue / final layer f32."""
    bf16 = jnp.bfloat16
    f32 = jnp.float32
    ep = _EPILOGUE_DTYPE

    def dot_w(x_bf16, w):
        return jnp.dot(x_bf16, w.astype(bf16), preferred_element_type=f32)

    def epi(acc, b):
        y = acc.astype(ep) + b.astype(ep)
        return jnp.maximum(y, 0.0).astype(bf16)

    x = X.astype(bf16)
    x1, x2 = x[:, :n_input], x[:, n_input:]
    h1 = epi(dot_w(x1, params["c1L1"][0]), params["c1L1"][1])
    h2 = epi(dot_w(x2, params["c2L1"][0]), params["c2L1"][1])
    y1 = epi(dot_w(h1, params["c1L2"][0]), params["c1L2"][1])
    y2 = epi(dot_w(h2, params["c2L2"][0]), params["c2L2"][1])
    w3, b3 = params["L3"]
    acc3 = dot_w(y1, w3[:LAYERSIZE, :]) + dot_w(y2, w3[LAYERSIZE:, :])
    y3 = epi(acc3, b3)
    w4, b4 = params["L4"]
    y4 = jnp.maximum(dot_w(y3, w4) + b4, 0.0)                       # f32
    w5, b5 = params["L5"]
    return y4 @ w5.astype(bf16).astype(f32) + b5


if __name__ == "__main__":
    key = jax.random.PRNGKey(0)
    n_input = 32

    k_params, k_x1, k_x2 = jax.random.split(key, 3)
    params = init_params(k_params, n_input)
    kparams = prepare_kernel_params(params, n_input)

    ok = True
    # Module expects X of width 2 * n_input (two concatenated branches).
    for batch, kx in ((8, k_x1), (200, k_x2)):
        X = jax.random.normal(kx, (batch, 2 * n_input), jnp.float32)

        out = neural_network_forward(X, kparams, n_input=n_input)
        out = jax.block_until_ready(out)

        ref_matched = reference_forward_matched(X, params, n_input)
        ref_f32 = reference_forward_f32(X, params, n_input)

        assert out.shape == (batch, 1)
        assert jnp.allclose(out, ref_matched, atol=5e-3, rtol=5e-3), \
            f"batch={batch}: mismatch vs numerics-matched JAX reference"
        assert jnp.allclose(out, ref_f32, atol=1.5e-1, rtol=1.5e-1), \
            f"batch={batch}: mismatch vs f32 JAX reference"
        ok = ok and True

    if ok:
        print("KERNEL_OK")
</pallas_src>

<mosaic_0001>
module attributes {stable_mosaic.version = 11 : i64} {
  func.func @mlp_kernel(%arg0: i32, %arg1: memref<8x64xf32, #tpu.memory_space<vmem>>, %arg2: memref<64x512xbf16, #tpu.memory_space<vmem>>, %arg3: memref<1x512xbf16, #tpu.memory_space<vmem>>, %arg4: memref<256x256xbf16, #tpu.memory_space<vmem>>, %arg5: memref<1x256xbf16, #tpu.memory_space<vmem>>, %arg6: memref<256x256xbf16, #tpu.memory_space<vmem>>, %arg7: memref<1x256xbf16, #tpu.memory_space<vmem>>, %arg8: memref<256x512xbf16, #tpu.memory_space<vmem>>, %arg9: memref<256x512xbf16, #tpu.memory_space<vmem>>, %arg10: memref<1x512xbf16, #tpu.memory_space<vmem>>, %arg11: memref<512x256xbf16, #tpu.memory_space<vmem>>, %arg12: memref<1x256xf32, #tpu.memory_space<vmem>>, %arg13: memref<1x256xbf16, #tpu.memory_space<vmem>>, %arg14: memref<1x1xf32, #tpu.memory_space<smem>>, %arg15: memref<8x1xf32, #tpu.memory_space<vmem>>) attributes {dimension_semantics = [#tpu.dimension_semantics<parallel>], iteration_bounds = array<i64: 1>, scalar_prefetch = 0 : i64, scratch_operands = 0 : i64, tpu.core_type = #tpu.core_type<tc>, window_params = [{transform_indices = @transform_0, window_bounds = array<i64: 8, 64>}, {pipeline_mode = #tpu.pipeline_mode<synchronous>, transform_indices = @transform_1, window_bounds = array<i64: 64, 512>}, {pipeline_mode = #tpu.pipeline_mode<synchronous>, transform_indices = @transform_2, window_bounds = array<i64: 1, 512>}, {pipeline_mode = #tpu.pipeline_mode<synchronous>, transform_indices = @transform_3, window_bounds = array<i64: 256, 256>}, {pipeline_mode = #tpu.pipeline_mode<synchronous>, transform_indices = @transform_4, window_bounds = array<i64: 1, 256>}, {pipeline_mode = #tpu.pipeline_mode<synchronous>, transform_indices = @transform_5, window_bounds = array<i64: 256, 256>}, {pipeline_mode = #tpu.pipeline_mode<synchronous>, transform_indices = @transform_6, window_bounds = array<i64: 1, 256>}, {pipeline_mode = #tpu.pipeline_mode<synchronous>, transform_indices = @transform_7, window_bounds = array<i64: 256, 512>}, {pipeline_mode = #tpu.pipeline_mode<synchronous>, transform_indices = @transform_8, window_bounds = array<i64: 256, 512>}, {pipeline_mode = #tpu.pipeline_mode<synchronous>, transform_indices = @transform_9, window_bounds = array<i64: 1, 512>}, {pipeline_mode = #tpu.pipeline_mode<synchronous>, transform_indices = @transform_10, window_bounds = array<i64: 512, 256>}, {pipeline_mode = #tpu.pipeline_mode<synchronous>, transform_indices = @transform_11, window_bounds = array<i64: 1, 256>}, {pipeline_mode = #tpu.pipeline_mode<synchronous>, transform_indices = @transform_12, window_bounds = array<i64: 1, 256>}, {transform_indices = @transform_13, window_bounds = array<i64: 1, 1>}, {transform_indices = @transform_14, window_bounds = array<i64: 8, 1>}]} {
    %c0 = arith.constant 0 : index
    %c0_0 = arith.constant 0 : index
    %0 = vector.load %arg1[%c0, %c0_0] : memref<8x64xf32, #tpu.memory_space<vmem>>, vector<8x64xf32>
    %1 = arith.truncf %0 : vector<8x64xf32> to vector<8x64xbf16>
    %c0_1 = arith.constant 0 : index
    %c0_2 = arith.constant 0 : index
    %2 = vector.load %arg2[%c0_1, %c0_2] : memref<64x512xbf16, #tpu.memory_space<vmem>>, vector<64x512xbf16>
    %cst = arith.constant dense<0.000000e+00> : vector<8x512xf32>
    %3 = tpu.matmul %1, %2, %cst {dimension_numbers = #tpu.dot_dimension_numbers<[1], [0], [0], [1], [0, 0, 1, 1], [], []>} : vector<8x64xbf16>, vector<64x512xbf16>, vector<8x512xf32> -> vector<8x512xf32>
    %4 = arith.truncf %3 : vector<8x512xf32> to vector<8x512xbf16>
    %c0_3 = arith.constant 0 : index
    %c0_4 = arith.constant 0 : index
    %5 = vector.load %arg3[%c0_3, %c0_4] : memref<1x512xbf16, #tpu.memory_space<vmem>>, vector<1x512xbf16>
    %6 = vector.broadcast %5 : vector<1x512xbf16> to vector<8x512xbf16>
    %7 = arith.addf %4, %6 : vector<8x512xbf16>
    %cst_5 = arith.constant 0.000000e+00 : bf16
    %8 = vector.broadcast %cst_5 : bf16 to vector<8x512xbf16>
    %9 = arith.maximumf %7, %8 : vector<8x512xbf16>
    %10 = vector.extract_strided_slice %9 {offsets = [0, 0], sizes = [8, 256], strides = [1, 1]} : vector<8x512xbf16> to vector<8x256xbf16>
    %11 = vector.extract_strided_slice %9 {offsets = [0, 256], sizes = [8, 256], strides = [1, 1]} : vector<8x512xbf16> to vector<8x256xbf16>
    %c0_6 = arith.constant 0 : index
    %c0_7 = arith.constant 0 : index
    %12 = vector.load %arg4[%c0_6, %c0_7] : memref<256x256xbf16, #tpu.memory_space<vmem>>, vector<256x256xbf16>
    %cst_8 = arith.constant dense<0.000000e+00> : vector<8x256xf32>
    %13 = tpu.matmul %10, %12, %cst_8 {dimension_numbers = #tpu.dot_dimension_numbers<[1], [0], [0], [1], [0, 0, 1, 1], [], []>} : vector<8x256xbf16>, vector<256x256xbf16>, vector<8x256xf32> -> vector<8x256xf32>
    %14 = arith.truncf %13 : vector<8x256xf32> to vector<8x256xbf16>
    %c0_9 = arith.constant 0 : index
    %c0_10 = arith.constant 0 : index
    %15 = vector.load %arg5[%c0_9, %c0_10] : memref<1x256xbf16, #tpu.memory_space<vmem>>, vector<1x256xbf16>
    %16 = vector.broadcast %15 : vector<1x256xbf16> to vector<8x256xbf16>
    %17 = arith.addf %14, %16 : vector<8x256xbf16>
    %cst_11 = arith.constant 0.000000e+00 : bf16
    %18 = vector.broadcast %cst_11 : bf16 to vector<8x256xbf16>
    %19 = arith.maximumf %17, %18 : vector<8x256xbf16>
    %c0_12 = arith.constant 0 : index
    %c0_13 = arith.constant 0 : index
    %20 = vector.load %arg6[%c0_12, %c0_13] : memref<256x256xbf16, #tpu.memory_space<vmem>>, vector<256x256xbf16>
    %cst_14 = arith.constant dense<0.000000e+00> : vector<8x256xf32>
    %21 = tpu.matmul %11, %20, %cst_14 {dimension_numbers = #tpu.dot_dimension_numbers<[1], [0], [0], [1], [0, 0, 1, 1], [], []>} : vector<8x256xbf16>, vector<256x256xbf16>, vector<8x256xf32> -> vector<8x256xf32>
    %22 = arith.truncf %21 : vector<8x256xf32> to vector<8x256xbf16>
    %c0_15 = arith.constant 0 : index
    %c0_16 = arith.constant 0 : index
    %23 = vector.load %arg7[%c0_15, %c0_16] : memref<1x256xbf16, #tpu.memory_space<vmem>>, vector<1x256xbf16>
    %24 = vector.broadcast %23 : vector<1x256xbf16> to vector<8x256xbf16>
    %25 = arith.addf %22, %24 : vector<8x256xbf16>
    %cst_17 = arith.constant 0.000000e+00 : bf16
    %26 = vector.broadcast %cst_17 : bf16 to vector<8x256xbf16>
    %27 = arith.maximumf %25, %26 : vector<8x256xbf16>
    %c0_18 = arith.constant 0 : index
    %c0_19 = arith.constant 0 : index
    %28 = vector.load %arg8[%c0_18, %c0_19] : memref<256x512xbf16, #tpu.memory_space<vmem>>, vector<256x512xbf16>
    %cst_20 = arith.constant dense<0.000000e+00> : vector<8x512xf32>
    %29 = tpu.matmul %19, %28, %cst_20 {dimension_numbers = #tpu.dot_dimension_numbers<[1], [0], [0], [1], [0, 0, 1, 1], [], []>} : vector<8x256xbf16>, vector<256x512xbf16>, vector<8x512xf32> -> vector<8x512xf32>
    %c0_21 = arith.constant 0 : index
    %c0_22 = arith.constant 0 : index
    %30 = vector.load %arg9[%c0_21, %c0_22] : memref<256x512xbf16, #tpu.memory_space<vmem>>, vector<256x512xbf16>
    %cst_23 = arith.constant dense<0.000000e+00> : vector<8x512xf32>
    %31 = tpu.matmul %27, %30, %cst_23 {dimension_numbers = #tpu.dot_dimension_numbers<[1], [0], [0], [1], [0, 0, 1, 1], [], []>} : vector<8x256xbf16>, vector<256x512xbf16>, vector<8x512xf32> -> vector<8x512xf32>
    %32 = arith.addf %29, %31 : vector<8x512xf32>
    %33 = arith.truncf %32 : vector<8x512xf32> to vector<8x512xbf16>
    %c0_24 = arith.constant 0 : index
    %c0_25 = arith.constant 0 : index
    %34 = vector.load %arg10[%c0_24, %c0_25] : memref<1x512xbf16, #tpu.memory_space<vmem>>, vector<1x512xbf16>
    %35 = vector.broadcast %34 : vector<1x512xbf16> to vector<8x512xbf16>
    %36 = arith.addf %33, %35 : vector<8x512xbf16>
    %cst_26 = arith.constant 0.000000e+00 : bf16
    %37 = vector.broadcast %cst_26 : bf16 to vector<8x512xbf16>
    %38 = arith.maximumf %36, %37 : vector<8x512xbf16>
    %c0_27 = arith.constant 0 : index
    %c0_28 = arith.constant 0 : index
    %39 = vector.load %arg11[%c0_27, %c0_28] : memref<512x256xbf16, #tpu.memory_space<vmem>>, vector<512x256xbf16>
    %cst_29 = arith.constant dense<0.000000e+00> : vector<8x256xf32>
    %40 = tpu.matmul %38, %39, %cst_29 {dimension_numbers = #tpu.dot_dimension_numbers<[1], [0], [0], [1], [0, 0, 1, 1], [], []>} : vector<8x512xbf16>, vector<512x256xbf16>, vector<8x256xf32> -> vector<8x256xf32>
    %c0_30 = arith.constant 0 : index
    %c0_31 = arith.constant 0 : index
    %41 = vector.load %arg12[%c0_30, %c0_31] : memref<1x256xf32, #tpu.memory_space<vmem>>, vector<1x256xf32>
    %42 = vector.broadcast %41 : vector<1x256xf32> to vector<8x256xf32>
    %43 = arith.addf %40, %42 : vector<8x256xf32>
    %cst_32 = arith.constant 0.000000e+00 : f32
    %44 = vector.broadcast %cst_32 : f32 to vector<8x256xf32>
    %45 = arith.maximumf %43, %44 : vector<8x256xf32>
    %c0_33 = arith.constant 0 : index
    %c0_34 = arith.constant 0 : index
    %46 = vector.load %arg13[%c0_33, %c0_34] : memref<1x256xbf16, #tpu.memory_space<vmem>>, vector<1x256xbf16>
    %47 = arith.extf %46 : vector<1x256xbf16> to vector<1x256xf32>
    %48 = vector.broadcast %47 : vector<1x256xf32> to vector<8x256xf32>
    %49 = arith.mulf %45, %48 : vector<8x256xf32>
    %cst_35 = arith.constant dense<0.000000e+00> : vector<8xf32>
    %50 = vector.multi_reduction <add>, %49, %cst_35 [1] : vector<8x256xf32> to vector<8xf32>
    %51 = vector.shape_cast %50 : vector<8xf32> to vector<8x1xf32>
    %c0_36 = arith.constant 0 : index
    %c0_37 = arith.constant 0 : index
    %52 = memref.load %arg14[%c0_36, %c0_37] : memref<1x1xf32, #tpu.memory_space<smem>>
    %53 = vector.broadcast %52 : f32 to vector<8x1xf32>
    %54 = arith.addf %51, %53 : vector<8x1xf32>
    %c0_38 = arith.constant 0 : index
    %c0_39 = arith.constant 0 : index
    %55 = vector.load %arg15[%c0_38, %c0_39] : memref<8x1xf32, #tpu.memory_space<vmem>>, vector<8x1xf32>
    tpu.vector_store %arg15[%c0_38, %c0_39], %54 {strides = array<i32>} : memref<8x1xf32, #tpu.memory_space<vmem>>, vector<8x1xf32>,
    return
  }
  func.func @transform_0(%arg0: i32) -> (i32, i32) {
    %c0_i32 = arith.constant 0 : i32
    %c0_i32_0 = arith.constant 0 : i32
    return %arg0, %c0_i32 : i32, i32
  }
  func.func @transform_1(%arg0: i32) -> (i32, i32) {
    %c0_i32 = arith.constant 0 : i32
    %c0_i32_0 = arith.constant 0 : i32
    %c0_i32_1 = arith.constant 0 : i32
    return %c0_i32, %c0_i32_0 : i32, i32
  }
  func.func @transform_2(%arg0: i32) -> (i32, i32) {
    %c0_i32 = arith.constant 0 : i32
    %c0_i32_0 = arith.constant 0 : i32
    %c0_i32_1 = arith.constant 0 : i32
    return %c0_i32, %c0_i32_0 : i32, i32
  }
  func.func @transform_3(%arg0: i32) -> (i32, i32) {
    %c0_i32 = arith.constant 0 : i32
    %c0_i32_0 = arith.constant 0 : i32
    %c0_i32_1 = arith.constant 0 : i32
    return %c0_i32, %c0_i32_0 : i32, i32
  }
  func.func @transform_4(%arg0: i32) -> (i32, i32) {
    %c0_i32 = arith.constant 0 : i32
    %c0_i32_0 = arith.constant 0 : i32
    %c0_i32_1 = arith.constant 0 : i32
    return %c0_i32, %c0_i32_0 : i32, i32
  }
  func.func @transform_5(%arg0: i32) -> (i32, i32) {
    %c0_i32 = arith.constant 0 : i32
    %c0_i32_0 = arith.constant 0 : i32
    %c0_i32_1 = arith.constant 0 : i32
    return %c0_i32, %c0_i32_0 : i32, i32
  }
  func.func @transform_6(%arg0: i32) -> (i32, i32) {
    %c0_i32 = arith.constant 0 : i32
    %c0_i32_0 = arith.constant 0 : i32
    %c0_i32_1 = arith.constant 0 : i32
    return %c0_i32, %c0_i32_0 : i32, i32
  }
  func.func @transform_7(%arg0: i32) -> (i32, i32) {
    %c0_i32 = arith.constant 0 : i32
    %c0_i32_0 = arith.constant 0 : i32
    %c0_i32_1 = arith.constant 0 : i32
    return %c0_i32, %c0_i32_0 : i32, i32
  }
  func.func @transform_8(%arg0: i32) -> (i32, i32) {
    %c0_i32 = arith.constant 0 : i32
    %c0_i32_0 = arith.constant 0 : i32
    %c0_i32_1 = arith.constant 0 : i32
    return %c0_i32, %c0_i32_0 : i32, i32
  }
  func.func @transform_9(%arg0: i32) -> (i32, i32) {
    %c0_i32 = arith.constant 0 : i32
    %c0_i32_0 = arith.constant 0 : i32
    %c0_i32_1 = arith.constant 0 : i32
    return %c0_i32, %c0_i32_0 : i32, i32
  }
  func.func @transform_10(%arg0: i32) -> (i32, i32) {
    %c0_i32 = arith.constant 0 : i32
    %c0_i32_0 = arith.constant 0 : i32
    %c0_i32_1 = arith.constant 0 : i32
    return %c0_i32, %c0_i32_0 : i32, i32
  }
  func.func @transform_11(%arg0: i32) -> (i32, i32) {
    %c0_i32 = arith.constant 0 : i32
    %c0_i32_0 = arith.constant 0 : i32
    %c0_i32_1 = arith.constant 0 : i32
    return %c0_i32, %c0_i32_0 : i32, i32
  }
  func.func @transform_12(%arg0: i32) -> (i32, i32) {
    %c0_i32 = arith.constant 0 : i32
    %c0_i32_0 = arith.constant 0 : i32
    %c0_i32_1 = arith.constant 0 : i32
    return %c0_i32, %c0_i32_0 : i32, i32
  }
  func.func @transform_13(%arg0: i32) -> (i32, i32) {
    %c0_i32 = arith.constant 0 : i32
    %c0_i32_0 = arith.constant 0 : i32
    %c0_i32_1 = arith.constant 0 : i32
    return %c0_i32, %c0_i32_0 : i32, i32
  }
  func.func @transform_14(%arg0: i32) -> (i32, i32) {
    %c0_i32 = arith.constant 0 : i32
    %c0_i32_0 = arith.constant 0 : i32
    return %arg0, %c0_i32 : i32, i32
  }
}

</mosaic_0001>

<llo_original>
// kernel: neural_network_forward.1
$region0: #{neural_network_forward.1}
  #allocation0 [shape = 'u32[]', space=smem, size = 0x4, offset = 0x4, fixed_abs, tag = 'smem constant byte address 0x4 - core index']
  #allocation1 [shape = 'u32[144,128]{1,0:T(1,128)}', space=vmem, size = 0x12000, scoped, tag = 'internal scratch']
  #allocation2 [shape = 'f32[1,1]{1,0:T(1,128)S(6)}', space=smem, size = 0x200, scoped, tag = 'scoped memory for neural_network_forward.1']
  %s0 = inlined_call_operand.hbm [shape: f32[8,64], index: 0, kind: input, shape index: {}]
  %s1 = inlined_call_operand.hbm [shape: bf16[64,512], index: 1, kind: input, shape index: {}]
  %s2 = inlined_call_operand.vmem [shape: bf16[1,512], index: 2, kind: input, shape index: {}]
  %s3 = inlined_call_operand.hbm [shape: bf16[256,256], index: 3, kind: input, shape index: {}]
  %s4 = inlined_call_operand.vmem [shape: bf16[1,256], index: 4, kind: input, shape index: {}]
  %s5 = inlined_call_operand.hbm [shape: bf16[256,256], index: 5, kind: input, shape index: {}]
  %s6 = inlined_call_operand.vmem [shape: bf16[1,256], index: 6, kind: input, shape index: {}]
  %s7 = inlined_call_operand.hbm [shape: bf16[256,512], index: 7, kind: input, shape index: {}]
  %s8 = inlined_call_operand.hbm [shape: bf16[256,512], index: 8, kind: input, shape index: {}]
  %s9 = inlined_call_operand.vmem [shape: bf16[1,512], index: 9, kind: input, shape index: {}]
  %s10 = inlined_call_operand.hbm [shape: bf16[512,256], index: 10, kind: input, shape index: {}]
  %s11 = inlined_call_operand.vmem [shape: f32[1,256], index: 11, kind: input, shape index: {}]
  %s12 = inlined_call_operand.vmem [shape: bf16[1,256], index: 12, kind: input, shape index: {}]
  %s13 = inlined_call_operand.<no memory space> [shape: f32[1,1], index: 13, kind: input, shape index: {}]
  %s14 = inlined_call_operand.vmem [shape: f32[8,1], index: 14, kind: output, shape index: {}]
  %s15 = sld [smem:[#allocation0]]
  $region94: #{neural_network_forward.1} parent=0
    _
  %s17 = ssub.s32 1, %s15
  %s18 = scalar_select 0, %s17, %s15
  %19 = sst [smem:[#allocation2]] %s13
  $region1: #{neural_network_forward.1} parent=0
    #allocation3 [shape = 'u8[4096]{0}', space=vmem, size = 0x1000, scoped, tag = 'input window, operand 0, single buffered']
    #allocation4 [shape = 's32[1]{0}', space=sflag, size = 0x4, scoped, tag = 'scoped memory for neural_network_forward.1']
    #allocation5 [shape = 'u8[65536]{0}', space=vmem, size = 0x10000, scoped, tag = 'input window, operand 1, single buffered']
    #allocation6 [shape = 's32[1]{0}', space=sflag, size = 0x4, scoped, tag = 'scoped memory for neural_network_forward.1']
    #allocation7 [shape = 'u8[131072]{0}', space=vmem, size = 0x20000, scoped, tag = 'input window, operand 3, single buffered']
    #allocation8 [shape = 'u8[131072]{0}', space=vmem, size = 0x20000, scoped, tag = 'input window, operand 5, single buffered']
    #allocation9 [shape = 's32[1]{0}', space=sflag, size = 0x4, scoped, tag = 'scoped memory for neural_network_forward.1']
    #allocation10 [shape = 'u8[262144]{0}', space=vmem, size = 0x40000, scoped, tag = 'input window, operand 7, single buffered']
    #allocation11 [shape = 'u8[262144]{0}', space=vmem, size = 0x40000, scoped, tag = 'input window, operand 8, single buffered']
    #allocation12 [shape = 's32[1]{0}', space=sflag, size = 0x4, scoped, tag = 'scoped memory for neural_network_forward.1']
    #allocation13 [shape = 'u8[262144]{0}', space=vmem, size = 0x40000, scoped, tag = 'input window, operand 10, single buffered']
    %20 = vsyncpa [#allocation4], 0
    %21 = vsyncpa [#allocation6], 0
    %22 = vsyncpa [#allocation9], 0
    %23 = vsyncpa [#allocation12], 0
    // Predicated region
    $region2: #{neural_network_forward.1} parent=1 // pred_check
      _
    $region3: #{neural_network_forward.1} parent=1 // pred_check_branch
      %25 = sbr.rel (0) target = $region5
    $region4: #{neural_network_forward.1} parent=1 // pred_region
      %s27 = ssub.s32 128, 128
      %28 = vsyncadd [#allocation4], %s27
      %s30 = sshll.u32 [#allocation3], 4
      %s31 = int_to_ptr.vmem [resolvable:$true] %s30
      %33 = dma.hbm_to_vmem [thread:$0]  %s0, 128, %s31, [#allocation4]
    $region5: #{neural_network_forward.1} parent=1 // pred_fallthru
      _
    // Predicated region
    $region6: #{neural_network_forward.1} parent=1 // pred_check
      _
    $region7: #{neural_network_forward.1} parent=1 // pred_check_branch
      %35 = sbr.rel (0) target = $region9
    $region8: #{neural_network_forward.1} parent=1 // pred_region
      %s37 = ssub.s32 2048, 2048
      %38 = vsyncadd [#allocation6], %s37
      %s39 = sshll.u32 [#allocation5], 4
      %s40 = int_to_ptr.vmem [resolvable:$true] %s39
      %45 = dma.hbm_to_vmem [thread:$0]  %s1, 2048, %s40, [#allocation6], 256, 256, 16
    $region9: #{neural_network_forward.1} parent=1 // pred_fallthru
      _
    // Predicated region
    $region10: #{neural_network_forward.1} parent=1 // pred_check
      _
    $region11: #{neural_network_forward.1} parent=1 // pred_check_branch
      %47 = sbr.rel (0) target = $region13
    $region12: #{neural_network_forward.1} parent=1 // pred_region
      _
    $region13: #{neural_network_forward.1} parent=1 // pred_fallthru
      _
    // Predicated region
    $region14: #{neural_network_forward.1} parent=1 // pred_check
      _
    $region15: #{neural_network_forward.1} parent=1 // pred_check_branch
      %49 = sbr.rel (0) target = $region17
    $region16: #{neural_network_forward.1} parent=1 // pred_region
      %s51 = ssub.s32 4096, 4096
      %52 = vsyncadd [#allocation6], %s51
      %s53 = sshll.u32 [#allocation7], 4
      %s54 = int_to_ptr.vmem [resolvable:$true] %s53
      %59 = dma.hbm_to_vmem [thread:$0]  %s3, 4096, %s54, [#allocation6], 128, 128, 8
    $region17: #{neural_network_forward.1} parent=1 // pred_fallthru
      _
    // Predicated region
    $region18: #{neural_network_forward.1} parent=1 // pred_check
      _
    $region19: #{neural_network_forward.1} parent=1 // pred_check_branch
      %61 = sbr.rel (0) target = $region21
    $region20: #{neural_network_forward.1} parent=1 // pred_region
      _
    $region21: #{neural_network_forward.1} parent=1 // pred_fallthru
      _
    // Predicated region
    $region22: #{neural_network_forward.1} parent=1 // pred_check
      _
    $region23: #{neural_network_forward.1} parent=1 // pred_check_branch
      %63 = sbr.rel (0) target = $region25
    $region24: #{neural_network_forward.1} parent=1 // pred_region
      %s65 = ssub.s32 4096, 4096
      %66 = vsyncadd [#allocation9], %s65
      %s67 = sshll.u32 [#allocation8], 4
      %s68 = int_to_ptr.vmem [resolvable:$true] %s67
      %73 = dma.hbm_to_vmem [thread:$0]  %s5, 4096, %s68, [#allocation9], 128, 128, 8
    $region25: #{neural_network_forward.1} parent=1 // pred_fallthru
      _
    // Predicated region
    $region26: #{neural_network_forward.1} parent=1 // pred_check
      _
    $region27: #{neural_network_forward.1} parent=1 // pred_check_branch
      %75 = sbr.rel (0) target = $region29
    $region28: #{neural_network_forward.1} parent=1 // pred_region
      _
    $region29: #{neural_network_forward.1} parent=1 // pred_fallthru
      _
    // Predicated region
    $region30: #{neural_network_forward.1} parent=1 // pred_check
      _
    $region31: #{neural_network_forward.1} parent=1 // pred_check_branch
      %77 = sbr.rel (0) target = $region33
    $region32: #{neural_network_forward.1} parent=1 // pred_region
      %s79 = ssub.s32 8192, 8192
      %80 = vsyncadd [#allocation9], %s79
      %s81 = sshll.u32 [#allocation10], 4
      %s82 = int_to_ptr.vmem [resolvable:$true] %s81
      %87 = dma.hbm_to_vmem [thread:$0]  %s7, 8192, %s82, [#allocation9], 256, 256, 16
    $region33: #{neural_network_forward.1} parent=1 // pred_fallthru
      _
    // Predicated region
    $region34: #{neural_network_forward.1} parent=1 // pred_check
      _
    $region35: #{neural_network_forward.1} parent=1 // pred_check_branch
      %89 = sbr.rel (0) target = $region37
    $region36: #{neural_network_forward.1} parent=1 // pred_region
      %s91 = ssub.s32 8192, 8192
      %92 = vsyncadd [#allocation12], %s91
      %s93 = sshll.u32 [#allocation11], 4
      %s94 = int_to_ptr.vmem [resolvable:$true] %s93
      %99 = dma.hbm_to_vmem [thread:$0]  %s8, 8192, %s94, [#allocation12], 256, 256, 16
    $region37: #{neural_network_forward.1} parent=1 // pred_fallthru
      _
    // Predicated region
    $region38: #{neural_network_forward.1} parent=1 // pred_check
      _
    $region39: #{neural_network_forward.1} parent=1 // pred_check_branch
      %101 = sbr.rel (0) target = $region41
    $region40: #{neural_network_forward.1} parent=1 // pred_region
      _
    $region41: #{neural_network_forward.1} parent=1 // pred_fallthru
      _
    // Predicated region
    $region42: #{neural_network_forward.1} parent=1 // pred_check
      _
    $region43: #{neural_network_forward.1} parent=1 // pred_check_branch
      %103 = sbr.rel (0) target = $region45
    $region44: #{neural_network_forward.1} parent=1 // pred_region
      %s105 = ssub.s32 8192, 8192
      %106 = vsyncadd [#allocation12], %s105
      %s107 = sshll.u32 [#allocation13], 4
      %s108 = int_to_ptr.vmem [resolvable:$true] %s107
      %113 = dma.hbm_to_vmem [thread:$0]  %s10, 8192, %s108, [#allocation12], 128, 128, 8
    $region45: #{neural_network_forward.1} parent=1 // pred_fallthru
      _
    // Predicated region
    $region46: #{neural_network_forward.1} parent=1 // pred_check
      _
    $region47: #{neural_network_forward.1} parent=1 // pred_check_branch
      %115 = sbr.rel (0) target = $region49
    $region48: #{neural_network_forward.1} parent=1 // pred_region
      _
    $region49: #{neural_network_forward.1} parent=1 // pred_fallthru
      _
    // Predicated region
    $region50: #{neural_network_forward.1} parent=1 // pred_check
      _
    $region51: #{neural_network_forward.1} parent=1 // pred_check_branch
      %117 = sbr.rel (0) target = $region53
    $region52: #{neural_network_forward.1} parent=1 // pred_region
      _
    $region53: #{neural_network_forward.1} parent=1 // pred_fallthru
      _
    // Predicated region
    $region54: #{neural_network_forward.1} parent=1 // pred_check
      _
    $region55: #{neural_network_forward.1} parent=1 // pred_check_branch
      %119 = sbr.rel (0) target = $region57
    $region56: #{neural_network_forward.1} parent=1 // pred_region
      _
    $region57: #{neural_network_forward.1} parent=1 // pred_fallthru
      _
    // Predicated region
    $region58: #{neural_network_forward.1} parent=1 // pred_check
      _
    $region59: #{neural_network_forward.1} parent=1 // pred_check_branch
      %121 = sbr.rel (0) target = $region61
    $region60: #{neural_network_forward.1} parent=1 // pred_region
      %122 = dma.done [#allocation4], 128
    $region61: #{neural_network_forward.1} parent=1 // pred_fallthru
      _
    // Predicated region
    $region62: #{neural_network_forward.1} parent=1 // pred_check
      _
    $region63: #{neural_network_forward.1} parent=1 // pred_check_branch
      %124 = sbr.rel (0) target = $region65
    $region64: #{neural_network_forward.1} parent=1 // pred_region
      %125 = dma.done [#allocation6], 2048
    $region65: #{neural_network_forward.1} parent=1 // pred_fallthru
      _
    // Predicated region
    $region66: #{neural_network_forward.1} parent=1 // pred_check
      _
    $region67: #{neural_network_forward.1} parent=1 // pred_check_branch
      %127 = sbr.rel (0) target = $region69
    $region68: #{neural_network_forward.1} parent=1 // pred_region
      %128 = dma.done [#allocation6], 4096
    $region69: #{neural_network_forward.1} parent=1 // pred_fallthru
      _
    // Predicated region
    $region70: #{neural_network_forward.1} parent=1 // pred_check
      _
    $region71: #{neural_network_forward.1} parent=1 // pred_check_branch
      %130 = sbr.rel (0) target = $region73
    $region72: #{neural_network_forward.1} parent=1 // pred_region
      %131 = dma.done [#allocation9], 4096
    $region73: #{neural_network_forward.1} parent=1 // pred_fallthru
      _
    // Predicated region
    $region74: #{neural_network_forward.1} parent=1 // pred_check
      _
    $region75: #{neural_network_forward.1} parent=1 // pred_check_branch
      %133 = sbr.rel (0) target = $region77
    $region76: #{neural_network_forward.1} parent=1 // pred_region
      %134 = dma.done [#allocation9], 8192
    $region77: #{neural_network_forward.1} parent=1 // pred_fallthru
      _
    // Predicated region
    $region78: #{neural_network_forward.1} parent=1 // pred_check
      _
    $region79: #{neural_network_forward.1} parent=1 // pred_check_branch
      %136 = sbr.rel (0) target = $region81
    $region80: #{neural_network_forward.1} parent=1 // pred_region
      %137 = dma.done [#allocation12], 8192
    $region81: #{neural_network_forward.1} parent=1 // pred_fallthru
      _
    // Predicated region
    $region82: #{neural_network_forward.1} parent=1 // pred_check
      _
    $region83: #{neural_network_forward.1} parent=1 // pred_check_branch
      %139 = sbr.rel (0) target = $region85
    $region84: #{neural_network_forward.1} parent=1 // pred_region
      %140 = dma.done [#allocation12], 8192
    $region85: #{neural_network_forward.1} parent=1 // pred_fallthru
      _
    %v142 = vld [vmem:[#allocation3] sm:$0xff]
    %v143 = vpack.c.bf16 %v142, %v142
    %v144 = vld [vmem:[#allocation5] sm:$0xff]
    %v145 = vld [vmem:[#allocation5 + $0x8] sm:$0xff]
    %v146 = vld [vmem:[#allocation5 + $0x10] sm:$0xff]
    %v147 = vld [vmem:[#allocation5 + $0x18] sm:$0xff]
    %v148 = vld [vmem:[#allocation5 + $0x20] sm:$0xff]
    %v149 = vld [vmem:[#allocation5 + $0x28] sm:$0xff]
    %v150 = vld [vmem:[#allocation5 + $0x30] sm:$0xff]
    %v151 = vld [vmem:[#allocation5 + $0x38] sm:$0xff]
    %v152 = vld [vmem:[#allocation5 + $0x40] sm:$0xff]
    %v153 = vld [vmem:[#allocation5 + $0x48] sm:$0xff]
    %v154 = vld [vmem:[#allocation5 + $0x50] sm:$0xff]
    %v155 = vld [vmem:[#allocation5 + $0x58] sm:$0xff]
    %v156 = vld [vmem:[#allocation5 + $0x60] sm:$0xff]
    %v157 = vld [vmem:[#allocation5 + $0x68] sm:$0xff]
    %v158 = vld [vmem:[#allocation5 + $0x70] sm:$0xff]
    %v159 = vld [vmem:[#allocation5 + $0x78] sm:$0xff]
    %v176 = vunpack.c.l.b16 %v144
    %v177 = vunpack.c.h.b16 %v144
    %v178 = vunpack.c.l.b16 %v145
    %v179 = vunpack.c.h.b16 %v145
    %v180 = vunpack.c.l.b16 %v146
    %v181 = vunpack.c.h.b16 %v146
    %v182 = vunpack.c.l.b16 %v147
    %v183 = vunpack.c.h.b16 %v147
    %v184 = vunpack.c.l.b16 %v148
    %v185 = vunpack.c.h.b16 %v148
    %v186 = vunpack.c.l.b16 %v149
    %v187 = vunpack.c.h.b16 %v149
    %v188 = vunpack.c.l.b16 %v150
    %v189 = vunpack.c.h.b16 %v150
    %v190 = vunpack.c.l.b16 %v151
    %v191 = vunpack.c.h.b16 %v151
    %v192 = vunpack.c.l.b16 %v152
    %v193 = vunpack.c.h.b16 %v152
    %v194 = vunpack.c.l.b16 %v153
    %v195 = vunpack.c.h.b16 %v153
    %v196 = vunpack.c.l.b16 %v154
    %v197 = vunpack.c.h.b16 %v154
    %v198 = vunpack.c.l.b16 %v155
    %v199 = vunpack.c.h.b16 %v155
    %v200 = vunpack.c.l.b16 %v156
    %v201 = vunpack.c.h.b16 %v156
    %v202 = vunpack.c.l.b16 %v157
    %v203 = vunpack.c.h.b16 %v157
    %v204 = vunpack.c.l.b16 %v158
    %v205 = vunpack.c.h.b16 %v158
    %v206 = vunpack.c.l.b16 %v159
    %v207 = vunpack.c.h.b16 %v159
    %v208 = vpack.c.b16 %v180, %v176
    %v209 = vpack.c.b16 %v181, %v177
    %v210 = vpack.c.b16 %v182, %v178
    %v211 = vpack.c.b16 %v183, %v179
    %v212 = vpack.c.b16 %v188, %v184
    %v213 = vpack.c.b16 %v189, %v185
    %v214 = vpack.c.b16 %v190, %v186
    %v215 = vpack.c.b16 %v191, %v187
    %v216 = vpack.c.b16 %v196, %v192
    %v217 = vpack.c.b16 %v197, %v193
    %v218 = vpack.c.b16 %v198, %v194
    %v219 = vpack.c.b16 %v199, %v195
    %v220 = vpack.c.b16 %v204, %v200
    %v221 = vpack.c.b16 %v205, %v201
    %v222 = vpack.c.b16 %v206, %v202
    %v223 = vpack.c.b16 %v207, %v203
    %vm240 = vcmask 523264
    %v242 = vsel %vm240, %v143, 0
    %244 = vmatprep.subr.bf16.mxu0 %v209
    %245 = vmatpush1.bf16.msra.mxu0 %v208
    %246 = vmatprep.subr.bf16.mxu0 %v213
    %247 = vmatpush1.bf16.msra.mxu0 %v212
    %248 = vmatprep.subr.bf16.mxu0 %v217
    %249 = vmatpush1.bf16.msra.mxu0 %v216
    %250 = vmatprep.subr.bf16.mxu0 %v221
    %251 = vmatpush1.bf16.msra.mxu0 %v220
    %252 = vmatprep.subr.bf16.mxu0 0
    %253 = vmatpush1.bf16.msra.mxu0 0
    %254 = vmatprep.subr.bf16.mxu0 0
    %255 = vmatpush1.bf16.msra.mxu0 0
    %256 = vmatprep.subr.bf16.mxu0 0
    %257 = vmatpush1.bf16.msra.mxu0 0
    %258 = vmatprep.subr.bf16.mxu0 0
    %259 = vmatpush1.bf16.msra.mxu0 0
    %260 = vmatprep.subr.bf16.mxu0 0
    %261 = vmatpush1.bf16.msra.mxu0 0
    %262 = vmatprep.subr.bf16.mxu0 0
    %263 = vmatpush1.bf16.msra.mxu0 0
    %264 = vmatprep.subr.bf16.mxu0 0
    %265 = vmatpush1.bf16.msra.mxu0 0
    %266 = vmatprep.subr.bf16.mxu0 0
    %267 = vmatpush1.bf16.msra.mxu0 0
    %268 = vmatprep.subr.bf16.mxu0 0
    %269 = vmatpush1.bf16.msra.mxu0 0
    %270 = vmatprep.subr.bf16.mxu0 0
    %271 = vmatpush1.bf16.msra.mxu0 0
    %272 = vmatprep.subr.bf16.mxu0 0
    %273 = vmatpush1.bf16.msra.mxu0 0
    %274 = vmatprep.subr.bf16.mxu0 0
    %275 = vmatpush1.bf16.msra.mxu0 0
    %276 = vmatprep.mubr.bf16.mxu0 0
    %277 = vmatmul.mubr.bf16.gmra.mrb[0].mxu0 %v242
    %v278 = vpop.f32.mrb[0].mxu0
    %v279 = vadd.f32 0.0, %v278
    %v280 = vpop.f32.mrb[0].mxu0
    %v281 = vadd.f32 0.0, %v280
    %v282 = vpop.f32.mrb[0].mxu0
    %v283 = vpop.f32.mrb[0].mxu0
    %284 = vdwg.mxu0
    %285 = vmatprep.subr.bf16.mxu0 %v211
    %286 = vmatpush1.bf16.msra.mxu0 %v210
    %287 = vmatprep.subr.bf16.mxu0 %v215
    %288 = vmatpush1.bf16.msra.mxu0 %v214
    %289 = vmatprep.subr.bf16.mxu0 %v219
    %290 = vmatpush1.bf16.msra.mxu0 %v218
    %291 = vmatprep.subr.bf16.mxu0 %v223
    %292 = vmatpush1.bf16.msra.mxu0 %v222
    %293 = vmatprep.subr.bf16.mxu0 0
    %294 = vmatpush1.bf16.msra.mxu0 0
    %295 = vmatprep.subr.bf16.mxu0 0
    %296 = vmatpush1.bf16.msra.mxu0 0
    %297 = vmatprep.subr.bf16.mxu0 0
    %298 = vmatpush1.bf16.msra.mxu0 0
    %299 = vmatprep.subr.bf16.mxu0 0
    %300 = vmatpush1.bf16.msra.mxu0 0
    %301 = vmatprep.subr.bf16.mxu0 0
    %302 = vmatpush1.bf16.msra.mxu0 0
    %303 = vmatprep.subr.bf16.mxu0 0
    %304 = vmatpush1.bf16.msra.mxu0 0
    %305 = vmatprep.subr.bf16.mxu0 0
    %306 = vmatpush1.bf16.msra.mxu0 0
    %307 = vmatprep.subr.bf16.mxu0 0
    %308 = vmatpush1.bf16.msra.mxu0 0
    %309 = vmatprep.subr.bf16.mxu0 0
    %310 = vmatpush1.bf16.msra.mxu0 0
    %311 = vmatprep.subr.bf16.mxu0 0
    %312 = vmatpush1.bf16.msra.mxu0 0
    %313 = vmatprep.subr.bf16.mxu0 0
    %314 = vmatpush1.bf16.msra.mxu0 0
    %315 = vmatprep.subr.bf16.mxu0 0
    %316 = vmatpush1.bf16.msra.mxu0 0
    %317 = vmatprep.mubr.bf16.mxu0 0
    %318 = vmatmul.mubr.bf16.gmra.mrb[0].mxu0 %v242
    %v319 = vpop.f32.mrb[0].mxu0
    %v320 = vadd.f32 0.0, %v319
    %v321 = vpop.f32.mrb[0].mxu0
    %v322 = vadd.f32 0.0, %v321
    %v323 = vpop.f32.mrb[0].mxu0
    %v324 = vpop.f32.mrb[0].mxu0
    %325 = vdwg.mxu0
    %v326 = vpack.c.bf16 %v279, %v279
    %v327 = vpack.c.bf16 %v281, %v281
    %v328 = vpack.c.bf16 %v320, %v320
    %v329 = vpack.c.bf16 %v322, %v322
    %v330 = vld [vmem:[%s2] sm:$0xf]
    %v333 = vunpack.c.l.s4 1966171168
    %v334 = vunpack.c.0.s8 %v333
    %v335 = vlaneseq
    %v336 = vshrl.u32 %v335, 7
    %v337 = vsub.s32 %v334, %v336
    %v338 = vrot.slane %v330, %v337
    %v339 = vcombine.high %v338, %v338
    %v341 = vunpack.c.l.s4 1966171168
    %v342 = vunpack.c.0.s8 %v341
    %v343 = vlaneseq
    %v344 = vshrl.u32 %v343, 7
    %v345 = vsub.s32 %v342, %v344
    %v346 = vrot.slane %v338, %v345
    %v348 = vunpack.c.l.s4 1966171168
    %v349 = vunpack.c.0.s8 %v348
    %v350 = vlaneseq
    %v351 = vshrl.u32 %v350, 7
    %v352 = vsub.s32 %v349, %v351
    %v353 = vrot.slane %v339, %v352
    %v354 = vcombine.high %v346, %v346
    %v355 = vcombine.high %v353, %v353
    %v357 = vpack.i.b16 %v346, %v346
    %v359 = vlaneseq
    %v360 = vshrl.u32 %v359, 7
    %v361 = vsub.s32 0, %v360
    %v362 = vrot.slane %v357, %v361
    %v364 = vpack.i.b16 %v353, %v353
    %v366 = vlaneseq
    %v367 = vshrl.u32 %v366, 7
    %v368 = vsub.s32 0, %v367
    %v369 = vrot.slane %v364, %v368
    %v371 = vpack.i.b16 %v354, %v354
    %v373 = vlaneseq
    %v374 = vshrl.u32 %v373, 7
    %v375 = vsub.s32 0, %v374
    %v376 = vrot.slane %v371, %v375
    %v378 = vpack.i.b16 %v355, %v355
    %v380 = vlaneseq
    %v381 = vshrl.u32 %v380, 7
    %v382 = vsub.s32 0, %v381
    %v383 = vrot.slane %v378, %v382
    %v384 = vadd.bf16 %v326, %v362
    %v385 = vadd.bf16 %v327, %v369
    %v386 = vadd.bf16 %v328, %v376
    %v387 = vadd.bf16 %v329, %v383
    %v388 = vmax.bf16 %v384, 0
    %v389 = vmax.bf16 %v385, 0
    %v390 = vmax.bf16 %v386, 0
    %v391 = vmax.bf16 %v387, 0
    %v392 = vld [vmem:[#allocation7] sm:$0xff]
    %v393 = vld [vmem:[#allocation7 + $0x8] sm:$0xff]
    %v394 = vld [vmem:[#allocation7 + $0x10] sm:$0xff]
    %v395 = vld [vmem:[#allocation7 + $0x18] sm:$0xff]
    %v396 = vld [vmem:[#allocation7 + $0x20] sm:$0xff]
    %v397 = vld [vmem:[#allocation7 + $0x28] sm:$0xff]
    %v398 = vld [vmem:[#allocation7 + $0x30] sm:$0xff]
    %v399 = vld [vmem:[#allocation7 + $0x38] sm:$0xff]
    %v400 = vld [vmem:[#allocation7 + $0x40] sm:$0xff]
    %v401 = vld [vmem:[#allocation7 + $0x48] sm:$0xff]
    %v402 = vld [vmem:[#allocation7 + $0x50] sm:$0xff]
    %v403 = vld [vmem:[#allocation7 + $0x58] sm:$0xff]
    %v404 = vld [vmem:[#allocation7 + $0x60] sm:$0xff]
    %v405 = vld [vmem:[#allocation7 + $0x68] sm:$0xff]
    %v406 = vld [vmem:[#allocation7 + $0x70] sm:$0xff]
    %v407 = vld [vmem:[#allocation7 + $0x78] sm:$0xff]
    %v408 = vld [vmem:[#allocation7 + $0x80] sm:$0xff]
    %v409 = vld [vmem:[#allocation7 + $0x88] sm:$0xff]
    %v410 = vld [vmem:[#allocation7 + $0x90] sm:$0xff]
    %v411 = vld [vmem:[#allocation7 + $0x98] sm:$0xff]
    %v412 = vld [vmem:[#allocation7 + $0xa0] sm:$0xff]
    %v413 = vld [vmem:[#allocation7 + $0xa8] sm:$0xff]
    %v414 = vld [vmem:[#allocation7 + $0xb0] sm:$0xff]
    %v415 = vld [vmem:[#allocation7 + $0xb8] sm:$0xff]
    %v416 = vld [vmem:[#allocation7 + $0xc0] sm:$0xff]
    %v417 = vld [vmem:[#allocation7 + $0xc8] sm:$0xff]
    %v418 = vld [vmem:[#allocation7 + $0xd0] sm:$0xff]
    %v419 = vld [vmem:[#allocation7 + $0xd8] sm:$0xff]
    %v420 = vld [vmem:[#allocation7 + $0xe0] sm:$0xff]
    %v421 = vld [vmem:[#allocation7 + $0xe8] sm:$0xff]
    %v422 = vld [vmem:[#allocation7 + $0xf0] sm:$0xff]
    %v423 = vld [vmem:[#allocation7 + $0xf8] sm:$0xff]
    %v456 = vunpack.c.l.b16 %v392
    %v457 = vunpack.c.h.b16 %v392
    %v458 = vunpack.c.l.b16 %v393
    %v459 = vunpack.c.h.b16 %v393
    %v460 = vunpack.c.l.b16 %v394
    %v461 = vunpack.c.h.b16 %v394
    %v462 = vunpack.c.l.b16 %v395
    %v463 = vunpack.c.h.b16 %v395
    %v464 = vunpack.c.l.b16 %v396
    %v465 = vunpack.c.h.b16 %v396
    %v466 = vunpack.c.l.b16 %v397
    %v467 = vunpack.c.h.b16 %v397
    %v468 = vunpack.c.l.b16 %v398
    %v469 = vunpack.c.h.b16 %v398
    %v470 = vunpack.c.l.b16 %v399
    %v471 = vunpack.c.h.b16 %v399
    %v472 = vunpack.c.l.b16 %v400
    %v473 = vunpack.c.h.b16 %v400
    %v474 = vunpack.c.l.b16 %v401
    %v475 = vunpack.c.h.b16 %v401
    %v476 = vunpack.c.l.b16 %v402
    %v477 = vunpack.c.h.b16 %v402
    %v478 = vunpack.c.l.b16 %v403
    %v479 = vunpack.c.h.b16 %v403
    %v480 = vunpack.c.l.b16 %v404
    %v481 = vunpack.c.h.b16 %v404
    %v482 = vunpack.c.l.b16 %v405
    %v483 = vunpack.c.h.b16 %v405
    %v484 = vunpack.c.l.b16 %v406
    %v485 = vunpack.c.h.b16 %v406
    %v486 = vunpack.c.l.b16 %v407
    %v487 = vunpack.c.h.b16 %v407
    %v488 = vunpack.c.l.b16 %v408
    %v489 = vunpack.c.h.b16 %v408
    %v490 = vunpack.c.l.b16 %v409
    %v491 = vunpack.c.h.b16 %v409
    %v492 = vunpack.c.l.b16 %v410
    %v493 = vunpack.c.h.b16 %v410
    %v494 = vunpack.c.l.b16 %v411
    %v495 = vunpack.c.h.b16 %v411
    %v496 = vunpack.c.l.b16 %v412
    %v497 = vunpack.c.h.b16 %v412
    %v498 = vunpack.c.l.b16 %v413
    %v499 = vunpack.c.h.b16 %v413
    %v500 = vunpack.c.l.b16 %v414
    %v501 = vunpack.c.h.b16 %v414
    %v502 = vunpack.c.l.b16 %v415
    %v503 = vunpack.c.h.b16 %v415
    %v504 = vunpack.c.l.b16 %v416
    %v505 = vunpack.c.h.b16 %v416
    %v506 = vunpack.c.l.b16 %v417
    %v507 = vunpack.c.h.b16 %v417
    %v508 = vunpack.c.l.b16 %v418
    %v509 = vunpack.c.h.b16 %v418
    %v510 = vunpack.c.l.b16 %v419
    %v511 = vunpack.c.h.b16 %v419
    %v512 = vunpack.c.l.b16 %v420
    %v513 = vunpack.c.h.b16 %v420
    %v514 = vunpack.c.l.b16 %v421
    %v515 = vunpack.c.h.b16 %v421
    %v516 = vunpack.c.l.b16 %v422
    %v517 = vunpack.c.h.b16 %v422
    %v518 = vunpack.c.l.b16 %v423
    %v519 = vunpack.c.h.b16 %v423
    %v520 = vpack.c.b16 %v458, %v456
    %v521 = vpack.c.b16 %v459, %v457
    %v522 = vpack.c.b16 %v462, %v460
    %v523 = vpack.c.b16 %v463, %v461
    %v524 = vpack.c.b16 %v466, %v464
    %v525 = vpack.c.b16 %v467, %v465
    %v526 = vpack.c.b16 %v470, %v468
    %v527 = vpack.c.b16 %v471, %v469
    %v528 = vpack.c.b16 %v474, %v472
    %v529 = vpack.c.b16 %v475, %v473
    %v530 = vpack.c.b16 %v478, %v476
    %v531 = vpack.c.b16 %v479, %v477
    %v532 = vpack.c.b16 %v482, %v480
    %v533 = vpack.c.b16 %v483, %v481
    %v534 = vpack.c.b16 %v486, %v484
    %v535 = vpack.c.b16 %v487, %v485
    %v536 = vpack.c.b16 %v490, %v488
    %v537 = vpack.c.b16 %v491, %v489
    %v538 = vpack.c.b16 %v494, %v492
    %v539 = vpack.c.b16 %v495, %v493
    %v540 = vpack.c.b16 %v498, %v496
    %v541 = vpack.c.b16 %v499, %v497
    %v542 = vpack.c.b16 %v502, %v500
    %v543 = vpack.c.b16 %v503, %v501
    %v544 = vpack.c.b16 %v506, %v504
    %v545 = vpack.c.b16 %v507, %v505
    %v546 = vpack.c.b16 %v510, %v508
    %v547 = vpack.c.b16 %v511, %v509
    %v548 = vpack.c.b16 %v514, %v512
    %v549 = vpack.c.b16 %v515, %v513
    %v550 = vpack.c.b16 %v518, %v516
    %v551 = vpack.c.b16 %v519, %v517
    %584 = vmatprep.subr.bf16.mxu0 %v521
    %585 = vmatpush1.bf16.msra.mxu0 %v520
    %586 = vmatprep.subr.bf16.mxu0 %v523
    %587 = vmatpush1.bf16.msra.mxu0 %v522
    %588 = vmatprep.subr.bf16.mxu0 %v525
    %589 = vmatpush1.bf16.msra.mxu0 %v524
    %590 = vmatprep.subr.bf16.mxu0 %v527
    %591 = vmatpush1.bf16.msra.mxu0 %v526
    %592 = vmatprep.subr.bf16.mxu0 %v529
    %593 = vmatpush1.bf16.msra.mxu0 %v528
    %594 = vmatprep.subr.bf16.mxu0 %v531
    %595 = vmatpush1.bf16.msra.mxu0 %v530
    %596 = vmatprep.subr.bf16.mxu0 %v533
    %597 = vmatpush1.bf16.msra.mxu0 %v532
    %598 = vmatprep.subr.bf16.mxu0 %v535
    %599 = vmatpush1.bf16.msra.mxu0 %v534
    %600 = vmatprep.subr.bf16.mxu0 %v537
    %601 = vmatpush1.bf16.msra.mxu0 %v536
    %602 = vmatprep.subr.bf16.mxu0 %v539
    %603 = vmatpush1.bf16.msra.mxu0 %v538
    %604 = vmatprep.subr.bf16.mxu0 %v541
    %605 = vmatpush1.bf16.msra.mxu0 %v540
    %606 = vmatprep.subr.bf16.mxu0 %v543
    %607 = vmatpush1.bf16.msra.mxu0 %v542
    %608 = vmatprep.subr.bf16.mxu0 %v545
    %609 = vmatpush1.bf16.msra.mxu0 %v544
    %610 = vmatprep.subr.bf16.mxu0 %v547
    %611 = vmatpush1.bf16.msra.mxu0 %v546
    %612 = vmatprep.subr.bf16.mxu0 %v549
    %613 = vmatpush1.bf16.msra.mxu0 %v548
    %614 = vmatprep.subr.bf16.mxu0 %v551
    %615 = vmatpush1.bf16.msra.mxu0 %v550
    %616 = vmatprep.mubr.bf16.mxu0 %v389
    %617 = vmatmul.mubr.bf16.gmra.mrb[0].mxu0 %v388
    %v618 = vpop.f32.mrb[0].mxu0
    %v619 = vadd.f32 0.0, %v618
    %v620 = vpop.f32.mrb[0].mxu0
    %v621 = vadd.f32 0.0, %v620
    %v622 = vpop.f32.mrb[0].mxu0
    %v623 = vpop.f32.mrb[0].mxu0
    %624 = vdwg.mxu0
    %v625 = vpack.c.bf16 %v619, %v619
    %v626 = vpack.c.bf16 %v621, %v621
    %v627 = vld [vmem:[%s4] sm:$0x3]
    %v630 = vunpack.c.l.s4 1966171168
    %v631 = vunpack.c.0.s8 %v630
    %v632 = vlaneseq
    %v633 = vshrl.u32 %v632, 7
    %v634 = vsub.s32 %v631, %v633
    %v635 = vrot.slane %v627, %v634
    %v636 = vcombine.high %v635, %v635
    %v638 = vunpack.c.l.s4 1966171168
    %v639 = vunpack.c.0.s8 %v638
    %v640 = vlaneseq
    %v641 = vshrl.u32 %v640, 7
    %v642 = vsub.s32 %v639, %v641
    %v643 = vrot.slane %v635, %v642
    %v645 = vunpack.c.l.s4 1966171168
    %v646 = vunpack.c.0.s8 %v645
    %v647 = vlaneseq
    %v648 = vshrl.u32 %v647, 7
    %v649 = vsub.s32 %v646, %v648
    %v650 = vrot.slane %v636, %v649
    %v652 = vpack.i.b16 %v643, %v643
    %v654 = vlaneseq
    %v655 = vshrl.u32 %v654, 7
    %v656 = vsub.s32 0, %v655
    %v657 = vrot.slane %v652, %v656
    %v659 = vpack.i.b16 %v650, %v650
    %v661 = vlaneseq
    %v662 = vshrl.u32 %v661, 7
    %v663 = vsub.s32 0, %v662
    %v664 = vrot.slane %v659, %v663
    %v665 = vadd.bf16 %v625, %v657
    %v666 = vadd.bf16 %v626, %v664
    %v667 = vmax.bf16 %v665, 0
    %v668 = vmax.bf16 %v666, 0
    %v669 = vld [vmem:[#allocation8] sm:$0xff]
    %v670 = vld [vmem:[#allocation8 + $0x8] sm:$0xff]
    %v671 = vld [vmem:[#allocation8 + $0x10] sm:$0xff]
    %v672 = vld [vmem:[#allocation8 + $0x18] sm:$0xff]
    %v673 = vld [vmem:[#allocation8 + $0x20] sm:$0xff]
    %v674 = vld [vmem:[#allocation8 + $0x28] sm:$0xff]
    %v675 = vld [vmem:[#allocation8 + $0x30] sm:$0xff]
    %v676 = vld [vmem:[#allocation8 + $0x38] sm:$0xff]
    %v677 = vld [vmem:[#allocation8 + $0x40] sm:$0xff]
    %v678 = vld [vmem:[#allocation8 + $0x48] sm:$0xff]
    %v679 = vld [vmem:[#allocation8 + $0x50] sm:$0xff]
    %v680 = vld [vmem:[#allocation8 + $0x58] sm:$0xff]
    %v681 = vld [vmem:[#allocation8 + $0x60] sm:$0xff]
    %v682 = vld [vmem:[#allocation8 + $0x68] sm:$0xff]
    %v683 = vld [vmem:[#allocation8 + $0x70] sm:$0xff]
    %v684 = vld [vmem:[#allocation8 + $0x78] sm:$0xff]
    %v685 = vld [vmem:[#allocation8 + $0x80] sm:$0xff]
    %v686 = vld [vmem:[#allocation8 + $0x88] sm:$0xff]
    %v687 = vld [vmem:[#allocation8 + $0x90] sm:$0xff]
    %v688 = vld [vmem:[#allocation8 + $0x98] sm:$0xff]
    %v689 = vld [vmem:[#allocation8 + $0xa0] sm:$0xff]
    %v690 = vld [vmem:[#allocation8 + $0xa8] sm:$0xff]
    %v691 = vld [vmem:[#allocation8 + $0xb0] sm:$0xff]
    %v692 = vld [vmem:[#allocation8 + $0xb8] sm:$0xff]
    %v693 = vld [vmem:[#allocation8 + $0xc0] sm:$0xff]
    %v694 = vld [vmem:[#allocation8 + $0xc8] sm:$0xff]
    %v695 = vld [vmem:[#allocation8 + $0xd0] sm:$0xff]
    %v696 = vld [vmem:[#allocation8 + $0xd8] sm:$0xff]
    %v697 = vld [vmem:[#allocation8 + $0xe0] sm:$0xff]
    %v698 = vld [vmem:[#allocation8 + $0xe8] sm:$0xff]
    %v699 = vld [vmem:[#allocation8 + $0xf0] sm:$0xff]
    %v700 = vld [vmem:[#allocation8 + $0xf8] sm:$0xff]
    %v733 = vunpack.c.l.b16 %v669
    %v734 = vunpack.c.h.b16 %v669
    %v735 = vunpack.c.l.b16 %v670
    %v736 = vunpack.c.h.b16 %v670
    %v737 = vunpack.c.l.b16 %v671
    %v738 = vunpack.c.h.b16 %v671
    %v739 = vunpack.c.l.b16 %v672
    %v740 = vunpack.c.h.b16 %v672
    %v741 = vunpack.c.l.b16 %v673
    %v742 = vunpack.c.h.b16 %v673
    %v743 = vunpack.c.l.b16 %v674
    %v744 = vunpack.c.h.b16 %v674
    %v745 = vunpack.c.l.b16 %v675
    %v746 = vunpack.c.h.b16 %v675
    %v747 = vunpack.c.l.b16 %v676
    %v748 = vunpack.c.h.b16 %v676
    %v749 = vunpack.c.l.b16 %v677
    %v750 = vunpack.c.h.b16 %v677
    %v751 = vunpack.c.l.b16 %v678
    %v752 = vunpack.c.h.b16 %v678
    %v753 = vunpack.c.l.b16 %v679
    %v754 = vunpack.c.h.b16 %v679
    %v755 = vunpack.c.l.b16 %v680
    %v756 = vunpack.c.h.b16 %v680
    %v757 = vunpack.c.l.b16 %v681
    %v758 = vunpack.c.h.b16 %v681
    %v759 = vunpack.c.l.b16 %v682
    %v760 = vunpack.c.h.b16 %v682
    %v761 = vunpack.c.l.b16 %v683
    %v762 = vunpack.c.h.b16 %v683
    %v763 = vunpack.c.l.b16 %v684
    %v764 = vunpack.c.h.b16 %v684
    %v765 = vunpack.c.l.b16 %v685
    %v766 = vunpack.c.h.b16 %v685
    %v767 = vunpack.c.l.b16 %v686
    %v768 = vunpack.c.h.b16 %v686
    %v769 = vunpack.c.l.b16 %v687
    %v770 = vunpack.c.h.b16 %v687
    %v771 = vunpack.c.l.b16 %v688
    %v772 = vunpack.c.h.b16 %v688
    %v773 = vunpack.c.l.b16 %v689
    %v774 = vunpack.c.h.b16 %v689
    %v775 = vunpack.c.l.b16 %v690
    %v776 = vunpack.c.h.b16 %v690
    %v777 = vunpack.c.l.b16 %v691
    %v778 = vunpack.c.h.b16 %v691
    %v779 = vunpack.c.l.b16 %v692
    %v780 = vunpack.c.h.b16 %v692
    %v781 = vunpack.c.l.b16 %v693
    %v782 = vunpack.c.h.b16 %v693
    %v783 = vunpack.c.l.b16 %v694
    %v784 = vunpack.c.h.b16 %v694
    %v785 = vunpack.c.l.b16 %v695
    %v786 = vunpack.c.h.b16 %v695
    %v787 = vunpack.c.l.b16 %v696
    %v788 = vunpack.c.h.b16 %v696
    %v789 = vunpack.c.l.b16 %v697
    %v790 = vunpack.c.h.b16 %v697
    %v791 = vunpack.c.l.b16 %v698
    %v792 = vunpack.c.h.b16 %v698
    %v793 = vunpack.c.l.b16 %v699
    %v794 = vunpack.c.h.b16 %v699
    %v795 = vunpack.c.l.b16 %v700
    %v796 = vunpack.c.h.b16 %v700
    %v797 = vpack.c.b16 %v735, %v733
    %v798 = vpack.c.b16 %v736, %v734
    %v799 = vpack.c.b16 %v739, %v737
    %v800 = vpack.c.b16 %v740, %v738
    %v801 = vpack.c.b16 %v743, %v741
    %v802 = vpack.c.b16 %v744, %v742
    %v803 = vpack.c.b16 %v747, %v745
    %v804 = vpack.c.b16 %v748, %v746
    %v805 = vpack.c.b16 %v751, %v749
    %v806 = vpack.c.b16 %v752, %v750
    %v807 = vpack.c.b16 %v755, %v753
    %v808 = vpack.c.b16 %v756, %v754
    %v809 = vpack.c.b16 %v759, %v757
    %v810 = vpack.c.b16 %v760, %v758
    %v811 = vpack.c.b16 %v763, %v761
    %v812 = vpack.c.b16 %v764, %v762
    %v813 = vpack.c.b16 %v767, %v765
    %v814 = vpack.c.b16 %v768, %v766
    %v815 = vpack.c.b16 %v771, %v769
    %v816 = vpack.c.b16 %v772, %v770
    %v817 = vpack.c.b16 %v775, %v773
    %v818 = vpack.c.b16 %v776, %v774
    %v819 = vpack.c.b16 %v779, %v777
    %v820 = vpack.c.b16 %v780, %v778
    %v821 = vpack.c.b16 %v783, %v781
    %v822 = vpack.c.b16 %v784, %v782
    %v823 = vpack.c.b16 %v787, %v785
    %v824 = vpack.c.b16 %v788, %v786
    %v825 = vpack.c.b16 %v791, %v789
    %v826 = vpack.c.b16 %v792, %v790
    %v827 = vpack.c.b16 %v795, %v793
    %v828 = vpack.c.b16 %v796, %v794
    %861 = vmatprep.subr.bf16.mxu0 %v798
    %862 = vmatpush1.bf16.msra.mxu0 %v797
    %863 = vmatprep.subr.bf16.mxu0 %v800
    %864 = vmatpush1.bf16.msra.mxu0 %v799
    %865 = vmatprep.subr.bf16.mxu0 %v802
    %866 = vmatpush1.bf16.msra.mxu0 %v801
    %867 = vmatprep.subr.bf16.mxu0 %v804
    %868 = vmatpush1.bf16.msra.mxu0 %v803
    %869 = vmatprep.subr.bf16.mxu0 %v806
    %870 = vmatpush1.bf16.msra.mxu0 %v805
    %871 = vmatprep.subr.bf16.mxu0 %v808
    %872 = vmatpush1.bf16.msra.mxu0 %v807
    %873 = vmatprep.subr.bf16.mxu0 %v810
    %874 = vmatpush1.bf16.msra.mxu0 %v809
    %875 = vmatprep.subr.bf16.mxu0 %v812
    %876 = vmatpush1.bf16.msra.mxu0 %v811
    %877 = vmatprep.subr.bf16.mxu0 %v814
    %878 = vmatpush1.bf16.msra.mxu0 %v813
    %879 = vmatprep.subr.bf16.mxu0 %v816
    %880 = vmatpush1.bf16.msra.mxu0 %v815
    %881 = vmatprep.subr.bf16.mxu0 %v818
    %882 = vmatpush1.bf16.msra.mxu0 %v817
    %883 = vmatprep.subr.bf16.mxu0 %v820
    %884 = vmatpush1.bf16.msra.mxu0 %v819
    %885 = vmatprep.subr.bf16.mxu0 %v822
    %886 = vmatpush1.bf16.msra.mxu0 %v821
    %887 = vmatprep.subr.bf16.mxu0 %v824
    %888 = vmatpush1.bf16.msra.mxu0 %v823
    %889 = vmatprep.subr.bf16.mxu0 %v826
    %890 = vmatpush1.bf16.msra.mxu0 %v825
    %891 = vmatprep.subr.bf16.mxu0 %v828
    %892 = vmatpush1.bf16.msra.mxu0 %v827
    %893 = vmatprep.mubr.bf16.mxu0 %v391
    %894 = vmatmul.mubr.bf16.gmra.mrb[0].mxu0 %v390
    %v895 = vpop.f32.mrb[0].mxu0
    %v896 = vadd.f32 0.0, %v895
    %v897 = vpop.f32.mrb[0].mxu0
    %v898 = vadd.f32 0.0, %v897
    %v899 = vpop.f32.mrb[0].mxu0
    %v900 = vpop.f32.mrb[0].mxu0
    %901 = vdwg.mxu0
    %v902 = vpack.c.bf16 %v896, %v896
    %v903 = vpack.c.bf16 %v898, %v898
    %v904 = vld [vmem:[%s6] sm:$0x3]
    %v907 = vunpack.c.l.s4 1966171168
    %v908 = vunpack.c.0.s8 %v907
    %v909 = vlaneseq
    %v910 = vshrl.u32 %v909, 7
    %v911 = vsub.s32 %v908, %v910
    %v912 = vrot.slane %v904, %v911
    %v913 = vcombine.high %v912, %v912
    %v915 = vunpack.c.l.s4 1966171168
    %v916 = vunpack.c.0.s8 %v915
    %v917 = vlaneseq
    %v918 = vshrl.u32 %v917, 7
    %v919 = vsub.s32 %v916, %v918
    %v920 = vrot.slane %v912, %v919
    %v922 = vunpack.c.l.s4 1966171168
    %v923 = vunpack.c.0.s8 %v922
    %v924 = vlaneseq
    %v925 = vshrl.u32 %v924, 7
    %v926 = vsub.s32 %v923, %v925
    %v927 = vrot.slane %v913, %v926
    %v929 = vpack.i.b16 %v920, %v920
    %v931 = vlaneseq
    %v932 = vshrl.u32 %v931, 7
    %v933 = vsub.s32 0, %v932
    %v934 = vrot.slane %v929, %v933
    %v936 = vpack.i.b16 %v927, %v927
    %v938 = vlaneseq
    %v939 = vshrl.u32 %v938, 7
    %v940 = vsub.s32 0, %v939
    %v941 = vrot.slane %v936, %v940
    %v942 = vadd.bf16 %v902, %v934
    %v943 = vadd.bf16 %v903, %v941
    %v944 = vmax.bf16 %v942, 0
    %v945 = vmax.bf16 %v943, 0
    %v946 = vld [vmem:[#allocation10] sm:$0xff]
    %v947 = vld [vmem:[#allocation10 + $0x8] sm:$0xff]
    %v948 = vld [vmem:[#allocation10 + $0x10] sm:$0xff]
    %v949 = vld [vmem:[#allocation10 + $0x18] sm:$0xff]
    %v950 = vld [vmem:[#allocation10 + $0x20] sm:$0xff]
    %v951 = vld [vmem:[#allocation10 + $0x28] sm:$0xff]
    %v952 = vld [vmem:[#allocation10 + $0x30] sm:$0xff]
    %v953 = vld [vmem:[#allocation10 + $0x38] sm:$0xff]
    %v954 = vld [vmem:[#allocation10 + $0x40] sm:$0xff]
    %v955 = vld [vmem:[#allocation10 + $0x48] sm:$0xff]
    %v956 = vld [vmem:[#allocation10 + $0x50] sm:$0xff]
    %v957 = vld [vmem:[#allocation10 + $0x58] sm:$0xff]
    %v958 = vld [vmem:[#allocation10 + $0x60] sm:$0xff]
    %v959 = vld [vmem:[#allocation10 + $0x68] sm:$0xff]
    %v960 = vld [vmem:[#allocation10 + $0x70] sm:$0xff]
    %v961 = vld [vmem:[#allocation10 + $0x78] sm:$0xff]
    %v962 = vld [vmem:[#allocation10 + $0x80] sm:$0xff]
    %v963 = vld [vmem:[#allocation10 + $0x88] sm:$0xff]
    %v964 = vld [vmem:[#allocation10 + $0x90] sm:$0xff]
    %v965 = vld [vmem:[#allocation10 + $0x98] sm:$0xff]
    %v966 = vld [vmem:[#allocation10 + $0xa0] sm:$0xff]
    %v967 = vld [vmem:[#allocation10 + $0xa8] sm:$0xff]
    %v968 = vld [vmem:[#allocation10 + $0xb0] sm:$0xff]
    %v969 = vld [vmem:[#allocation10 + $0xb8] sm:$0xff]
    %v970 = vld [vmem:[#allocation10 + $0xc0] sm:$0xff]
    %v971 = vld [vmem:[#allocation10 + $0xc8] sm:$0xff]
    %v972 = vld [vmem:[#allocation10 + $0xd0] sm:$0xff]
    %v973 = vld [vmem:[#allocation10 + $0xd8] sm:$0xff]
    %v974 = vld [vmem:[#allocation10 + $0xe0] sm:$0xff]
    %v975 = vld [vmem:[#allocation10 + $0xe8] sm:$0xff]
    %v976 = vld [vmem:[#allocation10 + $0xf0] sm:$0xff]
    %v977 = vld [vmem:[#allocation10 + $0xf8] sm:$0xff]
    %v978 = vld [vmem:[#allocation10 + $0x100] sm:$0xff]
    %v979 = vld [vmem:[#allocation10 + $0x108] sm:$0xff]
    %v980 = vld [vmem:[#allocation10 + $0x110] sm:$0xff]
    %v981 = vld [vmem:[#allocation10 + $0x118] sm:$0xff]
    %v982 = vld [vmem:[#allocation10 + $0x120] sm:$0xff]
    %v983 = vld [vmem:[#allocation10 + $0x128] sm:$0xff]
    %v984 = vld [vmem:[#allocation10 + $0x130] sm:$0xff]
    %v985 = vld [vmem:[#allocation10 + $0x138] sm:$0xff]
    %v986 = vld [vmem:[#allocation10 + $0x140] sm:$0xff]
    %v987 = vld [vmem:[#allocation10 + $0x148] sm:$0xff]
    %v988 = vld [vmem:[#allocation10 + $0x150] sm:$0xff]
    %v989 = vld [vmem:[#allocation10 + $0x158] sm:$0xff]
    %v990 = vld [vmem:[#allocation10 + $0x160] sm:$0xff]
    %v991 = vld [vmem:[#allocation10 + $0x168] sm:$0xff]
    %v992 = vld [vmem:[#allocation10 + $0x170] sm:$0xff]
    %v993 = vld [vmem:[#allocation10 + $0x178] sm:$0xff]
    %v994 = vld [vmem:[#allocation10 + $0x180] sm:$0xff]
    %v995 = vld [vmem:[#allocation10 + $0x188] sm:$0xff]
    %v996 = vld [vmem:[#allocation10 + $0x190] sm:$0xff]
    %v997 = vld [vmem:[#allocation10 + $0x198] sm:$0xff]
    %v998 = vld [vmem:[#allocation10 + $0x1a0] sm:$0xff]
    %v999 = vld [vmem:[#allocation10 + $0x1a8] sm:$0xff]
    %v1000 = vld [vmem:[#allocation10 + $0x1b0] sm:$0xff]
    %v1001 = vld [vmem:[#allocation10 + $0x1b8] sm:$0xff]
    %v1002 = vld [vmem:[#allocation10 + $0x1c0] sm:$0xff]
    %v1003 = vld [vmem:[#allocation10 + $0x1c8] sm:$0xff]
    %v1004 = vld [vmem:[#allocation10 + $0x1d0] sm:$0xff]
    %v1005 = vld [vmem:[#allocation10 + $0x1d8] sm:$0xff]
    %v1006 = vld [vmem:[#allocation10 + $0x1e0] sm:$0xff]
    %v1007 = vld [vmem:[#allocation10 + $0x1e8] sm:$0xff]
    %v1008 = vld [vmem:[#allocation10 + $0x1f0] sm:$0xff]
    %v1009 = vld [vmem:[#allocation10 + $0x1f8] sm:$0xff]
    %v1010 = vld [vmem:[#allocation11] sm:$0xff]
    %v1011 = vld [vmem:[#allocation11 + $0x8] sm:$0xff]
    %v1012 = vld [vmem:[#allocation11 + $0x10] sm:$0xff]
    %v1013 = vld [vmem:[#allocation11 + $0x18] sm:$0xff]
    %v1014 = vld [vmem:[#allocation11 + $0x20] sm:$0xff]
    %v1015 = vld [vmem:[#allocation11 + $0x28] sm:$0xff]
    %v1016 = vld [vmem:[#allocation11 + $0x30] sm:$0xff]
    %v1017 = vld [vmem:[#allocation11 + $0x38] sm:$0xff]
    %v1018 = vld [vmem:[#allocation11 + $0x40] sm:$0xff]
    %v1019 = vld [vmem:[#allocation11 + $0x48] sm:$0xff]
    %v1020 = vld [vmem:[#allocation11 + $0x50] sm:$0xff]
    %v1021 = vld [vmem:[#allocation11 + $0x58] sm:$0xff]
    %v1022 = vld [vmem:[#allocation11 + $0x60] sm:$0xff]
    %v1023 = vld [vmem:[#allocation11 + $0x68] sm:$0xff]
    %v1024 = vld [vmem:[#allocation11 + $0x70] sm:$0xff]
    %v1025 = vld [vmem:[#allocation11 + $0x78] sm:$0xff]
    %v1026 = vld [vmem:[#allocation11 + $0x80] sm:$0xff]
    %v1027 = vld [vmem:[#allocation11 + $0x88] sm:$0xff]
    %v1028 = vld [vmem:[#allocation11 + $0x90] sm:$0xff]
    %v1029 = vld [vmem:[#allocation11 + $0x98] sm:$0xff]
    %v1030 = vld [vmem:[#allocation11 + $0xa0] sm:$0xff]
    %v1031 = vld [vmem:[#allocation11 + $0xa8] sm:$0xff]
    %v1032 = vld [vmem:[#allocation11 + $0xb0] sm:$0xff]
    %v1033 = vld [vmem:[#allocation11 + $0xb8] sm:$0xff]
    %v1034 = vld [vmem:[#allocation11 + $0xc0] sm:$0xff]
    %v1035 = vld [vmem:[#allocation11 + $0xc8] sm:$0xff]
    %v1036 = vld [vmem:[#allocation11 + $0xd0] sm:$0xff]
    %v1037 = vld [vmem:[#allocation11 + $0xd8] sm:$0xff]
    %v1038 = vld [vmem:[#allocation11 + $0xe0] sm:$0xff]
    %v1039 = vld [vmem:[#allocation11 + $0xe8] sm:$0xff]
    %v1040 = vld [vmem:[#allocation11 + $0xf0] sm:$0xff]
    %v1041 = vld [vmem:[#allocation11 + $0xf8] sm:$0xff]
    %v1042 = vld [vmem:[#allocation11 + $0x100] sm:$0xff]
    %v1043 = vld [vmem:[#allocation11 + $0x108] sm:$0xff]
    %v1044 = vld [vmem:[#allocation11 + $0x110] sm:$0xff]
    %v1045 = vld [vmem:[#allocation11 + $0x118] sm:$0xff]
    %v1046 = vld [vmem:[#allocation11 + $0x120] sm:$0xff]
    %v1047 = vld [vmem:[#allocation11 + $0x128] sm:$0xff]
    %v1048 = vld [vmem:[#allocation11 + $0x130] sm:$0xff]
    %v1049 = vld [vmem:[#allocation11 + $0x138] sm:$0xff]
    %v1050 = vld [vmem:[#allocation11 + $0x140] sm:$0xff]
    %v1051 = vld [vmem:[#allocation11 + $0x148] sm:$0xff]
    %v1052 = vld [vmem:[#allocation11 + $0x150] sm:$0xff]
    %v1053 = vld [vmem:[#allocation11 + $0x158] sm:$0xff]
    %v1054 = vld [vmem:[#allocation11 + $0x160] sm:$0xff]
    %v1055 = vld [vmem:[#allocation11 + $0x168] sm:$0xff]
    %v1056 = vld [vmem:[#allocation11 + $0x170] sm:$0xff]
    %v1057 = vld [vmem:[#allocation11 + $0x178] sm:$0xff]
    %v1058 = vld [vmem:[#allocation11 + $0x180] sm:$0xff]
    %v1059 = vld [vmem:[#allocation11 + $0x188] sm:$0xff]
    %v1060 = vld [vmem:[#allocation11 + $0x190] sm:$0xff]
    %v1061 = vld [vmem:[#allocation11 + $0x198] sm:$0xff]
    %v1062 = vld [vmem:[#allocation11 + $0x1a0] sm:$0xff]
    %v1063 = vld [vmem:[#allocation11 + $0x1a8] sm:$0xff]
    %v1064 = vld [vmem:[#allocation11 + $0x1b0] sm:$0xff]
    %v1065 = vld [vmem:[#allocation11 + $0x1b8] sm:$0xff]
    %v1066 = vld [vmem:[#allocation11 + $0x1c0] sm:$0xff]
    %v1067 = vld [vmem:[#allocation11 + $0x1c8] sm:$0xff]
    %v1068 = vld [vmem:[#allocation11 + $0x1d0] sm:$0xff]
    %v1069 = vld [vmem:[#allocation11 + $0x1d8] sm:$0xff]
    %v1070 = vld [vmem:[#allocation11 + $0x1e0] sm:$0xff]
    %v1071 = vld [vmem:[#allocation11 + $0x1e8] sm:$0xff]
    %v1072 = vld [vmem:[#allocation11 + $0x1f0] sm:$0xff]
    %v1073 = vld [vmem:[#allocation11 + $0x1f8] sm:$0xff]
    %v1138 = vunpack.c.l.b16 %v1010
    %v1139 = vunpack.c.h.b16 %v1010
    %v1140 = vunpack.c.l.b16 %v1011
    %v1141 = vunpack.c.h.b16 %v1011
    %v1142 = vunpack.c.l.b16 %v1012
    %v1143 = vunpack.c.h.b16 %v1012
    %v1144 = vunpack.c.l.b16 %v1013
    %v1145 = vunpack.c.h.b16 %v1013
    %v1146 = vunpack.c.l.b16 %v1014
    %v1147 = vunpack.c.h.b16 %v1014
    %v1148 = vunpack.c.l.b16 %v1015
    %v1149 = vunpack.c.h.b16 %v1015
    %v1150 = vunpack.c.l.b16 %v1016
    %v1151 = vunpack.c.h.b16 %v1016
    %v1152 = vunpack.c.l.b16 %v1017
    %v1153 = vunpack.c.h.b16 %v1017
    %v1154 = vunpack.c.l.b16 %v1018
    %v1155 = vunpack.c.h.b16 %v1018
    %v1156 = vunpack.c.l.b16 %v1019
    %v1157 = vunpack.c.h.b16 %v1019
    %v1158 = vunpack.c.l.b16 %v1020
    %v1159 = vunpack.c.h.b16 %v1020
    %v1160 = vunpack.c.l.b16 %v1021
    %v1161 = vunpack.c.h.b16 %v1021
    %v1162 = vunpack.c.l.b16 %v1022
    %v1163 = vunpack.c.h.b16 %v1022
    %v1164 = vunpack.c.l.b16 %v1023
    %v1165 = vunpack.c.h.b16 %v1023
    %v1166 = vunpack.c.l.b16 %v1024
    %v1167 = vunpack.c.h.b16 %v1024
    %v1168 = vunpack.c.l.b16 %v1025
    %v1169 = vunpack.c.h.b16 %v1025
    %v1170 = vunpack.c.l.b16 %v1026
    %v1171 = vunpack.c.h.b16 %v1026
    %v1172 = vunpack.c.l.b16 %v1027
    %v1173 = vunpack.c.h.b16 %v1027
    %v1174 = vunpack.c.l.b16 %v1028
    %v1175 = vunpack.c.h.b16 %v1028
    %v1176 = vunpack.c.l.b16 %v1029
    %v1177 = vunpack.c.h.b16 %v1029
    %v1178 = vunpack.c.l.b16 %v1030
    %v1179 = vunpack.c.h.b16 %v1030
    %v1180 = vunpack.c.l.b16 %v1031
    %v1181 = vunpack.c.h.b16 %v1031
    %v1182 = vunpack.c.l.b16 %v1032
    %v1183 = vunpack.c.h.b16 %v1032
    %v1184 = vunpack.c.l.b16 %v1033
    %v1185 = vunpack.c.h.b16 %v1033
    %v1186 = vunpack.c.l.b16 %v1034
    %v1187 = vunpack.c.h.b16 %v1034
    %v1188 = vunpack.c.l.b16 %v1035
    %v1189 = vunpack.c.h.b16 %v1035
    %v1190 = vunpack.c.l.b16 %v1036
    %v1191 = vunpack.c.h.b16 %v1036
    %v1192 = vunpack.c.l.b16 %v1037
    %v1193 = vunpack.c.h.b16 %v1037
    %v1194 = vunpack.c.l.b16 %v1038
    %v1195 = vunpack.c.h.b16 %v1038
    %v1196 = vunpack.c.l.b16 %v1039
    %v1197 = vunpack.c.h.b16 %v1039
    %v1198 = vunpack.c.l.b16 %v1040
    %v1199 = vunpack.c.h.b16 %v1040
    %v1200 = vunpack.c.l.b16 %v1041
    %v1201 = vunpack.c.h.b16 %v1041
    %v1202 = vunpack.c.l.b16 %v1042
    %v1203 = vunpack.c.h.b16 %v1042
    %v1204 = vunpack.c.l.b16 %v1043
    %v1205 = vunpack.c.h.b16 %v1043
    %v1206 = vunpack.c.l.b16 %v1044
    %v1207 = vunpack.c.h.b16 %v1044
    %v1208 = vunpack.c.l.b16 %v1045
    %v1209 = vunpack.c.h.b16 %v1045
    %v1210 = vunpack.c.l.b16 %v1046
    %v1211 = vunpack.c.h.b16 %v1046
    %v1212 = vunpack.c.l.b16 %v1047
    %v1213 = vunpack.c.h.b16 %v1047
    %v1214 = vunpack.c.l.b16 %v1048
    %v1215 = vunpack.c.h.b16 %v1048
    %v1216 = vunpack.c.l.b16 %v1049
    %v1217 = vunpack.c.h.b16 %v1049
    %v1218 = vunpack.c.l.b16 %v1050
    %v1219 = vunpack.c.h.b16 %v1050
    %v1220 = vunpack.c.l.b16 %v1051
    %v1221 = vunpack.c.h.b16 %v1051
    %v1222 = vunpack.c.l.b16 %v1052
    %v1223 = vunpack.c.h.b16 %v1052
    %v1224 = vunpack.c.l.b16 %v1053
    %v1225 = vunpack.c.h.b16 %v1053
    %v1226 = vunpack.c.l.b16 %v1054
    %v1227 = vunpack.c.h.b16 %v1054
    %v1228 = vunpack.c.l.b16 %v1055
    %v1229 = vunpack.c.h.b16 %v1055
    %v1230 = vunpack.c.l.b16 %v1056
    %v1231 = vunpack.c.h.b16 %v1056
    %v1232 = vunpack.c.l.b16 %v1057
    %v1233 = vunpack.c.h.b16 %v1057
    %v1234 = vunpack.c.l.b16 %v1058
    %v1235 = vunpack.c.h.b16 %v1058
    %v1236 = vunpack.c.l.b16 %v1059
    %v1237 = vunpack.c.h.b16 %v1059
    %v1238 = vunpack.c.l.b16 %v1060
    %v1239 = vunpack.c.h.b16 %v1060
    %v1240 = vunpack.c.l.b16 %v1061
    %v1241 = vunpack.c.h.b16 %v1061
    %v1242 = vunpack.c.l.b16 %v1062
    %v1243 = vunpack.c.h.b16 %v1062
    %v1244 = vunpack.c.l.b16 %v1063
    %v1245 = vunpack.c.h.b16 %v1063
    %v1246 = vunpack.c.l.b16 %v1064
    %v1247 = vunpack.c.h.b16 %v1064
    %v1248 = vunpack.c.l.b16 %v1065
    %v1249 = vunpack.c.h.b16 %v1065
    %v1250 = vunpack.c.l.b16 %v1066
    %v1251 = vunpack.c.h.b16 %v1066
    %v1252 = vunpack.c.l.b16 %v1067
    %v1253 = vunpack.c.h.b16 %v1067
    %v1254 = vunpack.c.l.b16 %v1068
    %v1255 = vunpack.c.h.b16 %v1068
    %v1256 = vunpack.c.l.b16 %v1069
    %v1257 = vunpack.c.h.b16 %v1069
    %v1258 = vunpack.c.l.b16 %v1070
    %v1259 = vunpack.c.h.b16 %v1070
    %v1260 = vunpack.c.l.b16 %v1071
    %v1261 = vunpack.c.h.b16 %v1071
    %v1262 = vunpack.c.l.b16 %v1072
    %v1263 = vunpack.c.h.b16 %v1072
    %v1264 = vunpack.c.l.b16 %v1073
    %v1265 = vunpack.c.h.b16 %v1073
    %v1266 = vpack.c.b16 %v1142, %v1138
    %v1267 = vpack.c.b16 %v1143, %v1139
    %v1268 = vpack.c.b16 %v1144, %v1140
    %v1269 = vpack.c.b16 %v1145, %v1141
    %v1270 = vpack.c.b16 %v1150, %v1146
    %v1271 = vpack.c.b16 %v1151, %v1147
    %v1272 = vpack.c.b16 %v1152, %v1148
    %v1273 = vpack.c.b16 %v1153, %v1149
    %v1274 = vpack.c.b16 %v1158, %v1154
    %v1275 = vpack.c.b16 %v1159, %v1155
    %v1276 = vpack.c.b16 %v1160, %v1156
    %v1277 = vpack.c.b16 %v1161, %v1157
    %v1278 = vpack.c.b16 %v1166, %v1162
    %v1279 = vpack.c.b16 %v1167, %v1163
    %v1280 = vpack.c.b16 %v1168, %v1164
    %v1281 = vpack.c.b16 %v1169, %v1165
    %v1282 = vpack.c.b16 %v1174, %v1170
    %v1283 = vpack.c.b16 %v1175, %v1171
    %v1284 = vpack.c.b16 %v1176, %v1172
    %v1285 = vpack.c.b16 %v1177, %v1173
    %v1286 = vpack.c.b16 %v1182, %v1178
    %v1287 = vpack.c.b16 %v1183, %v1179
    %v1288 = vpack.c.b16 %v1184, %v1180
    %v1289 = vpack.c.b16 %v1185, %v1181
    %v1290 = vpack.c.b16 %v1190, %v1186
    %v1291 = vpack.c.b16 %v1191, %v1187
    %v1292 = vpack.c.b16 %v1192, %v1188
    %v1293 = vpack.c.b16 %v1193, %v1189
    %v1294 = vpack.c.b16 %v1198, %v1194
    %v1295 = vpack.c.b16 %v1199, %v1195
    %v1296 = vpack.c.b16 %v1200, %v1196
    %v1297 = vpack.c.b16 %v1201, %v1197
    %v1298 = vpack.c.b16 %v1206, %v1202
    %v1299 = vpack.c.b16 %v1207, %v1203
    %v1300 = vpack.c.b16 %v1208, %v1204
    %v1301 = vpack.c.b16 %v1209, %v1205
    %v1302 = vpack.c.b16 %v1214, %v1210
    %v1303 = vpack.c.b16 %v1215, %v1211
    %v1304 = vpack.c.b16 %v1216, %v1212
    %v1305 = vpack.c.b16 %v1217, %v1213
    %v1306 = vpack.c.b16 %v1222, %v1218
    %v1307 = vpack.c.b16 %v1223, %v1219
    %v1308 = vpack.c.b16 %v1224, %v1220
    %v1309 = vpack.c.b16 %v1225, %v1221
    %v1310 = vpack.c.b16 %v1230, %v1226
    %v1311 = vpack.c.b16 %v1231, %v1227
    %v1312 = vpack.c.b16 %v1232, %v1228
    %v1313 = vpack.c.b16 %v1233, %v1229
    %v1314 = vpack.c.b16 %v1238, %v1234
    %v1315 = vpack.c.b16 %v1239, %v1235
    %v1316 = vpack.c.b16 %v1240, %v1236
    %v1317 = vpack.c.b16 %v1241, %v1237
    %v1318 = vpack.c.b16 %v1246, %v1242
    %v1319 = vpack.c.b16 %v1247, %v1243
    %v1320 = vpack.c.b16 %v1248, %v1244
    %v1321 = vpack.c.b16 %v1249, %v1245
    %v1322 = vpack.c.b16 %v1254, %v1250
    %v1323 = vpack.c.b16 %v1255, %v1251
    %v1324 = vpack.c.b16 %v1256, %v1252
    %v1325 = vpack.c.b16 %v1257, %v1253
    %v1326 = vpack.c.b16 %v1262, %v1258
    %v1327 = vpack.c.b16 %v1263, %v1259
    %v1328 = vpack.c.b16 %v1264, %v1260
    %v1329 = vpack.c.b16 %v1265, %v1261
    %1394 = vmatprep.subr.bf16.mxu0 %v1267
    %1395 = vmatpush1.bf16.msra.mxu0 %v1266
    %1396 = vmatprep.subr.bf16.mxu0 %v1271
    %1397 = vmatpush1.bf16.msra.mxu0 %v1270
    %1398 = vmatprep.subr.bf16.mxu0 %v1275
    %1399 = vmatpush1.bf16.msra.mxu0 %v1274
    %1400 = vmatprep.subr.bf16.mxu0 %v1279
    %1401 = vmatpush1.bf16.msra.mxu0 %v1278
    %1402 = vmatprep.subr.bf16.mxu0 %v1283
    %1403 = vmatpush1.bf16.msra.mxu0 %v1282
    %1404 = vmatprep.subr.bf16.mxu0 %v1287
    %1405 = vmatpush1.bf16.msra.mxu0 %v1286
    %1406 = vmatprep.subr.bf16.mxu0 %v1291
    %1407 = vmatpush1.bf16.msra.mxu0 %v1290
    %1408 = vmatprep.subr.bf16.mxu0 %v1295
    %1409 = vmatpush1.bf16.msra.mxu0 %v1294
    %1410 = vmatprep.subr.bf16.mxu0 %v1299
    %1411 = vmatpush1.bf16.msra.mxu0 %v1298
    %1412 = vmatprep.subr.bf16.mxu0 %v1303
    %1413 = vmatpush1.bf16.msra.mxu0 %v1302
    %1414 = vmatprep.subr.bf16.mxu0 %v1307
    %1415 = vmatpush1.bf16.msra.mxu0 %v1306
    %1416 = vmatprep.subr.bf16.mxu0 %v1311
    %1417 = vmatpush1.bf16.msra.mxu0 %v1310
    %1418 = vmatprep.subr.bf16.mxu0 %v1315
    %1419 = vmatpush1.bf16.msra.mxu0 %v1314
    %1420 = vmatprep.subr.bf16.mxu0 %v1319
    %1421 = vmatpush1.bf16.msra.mxu0 %v1318
    %1422 = vmatprep.subr.bf16.mxu0 %v1323
    %1423 = vmatpush1.bf16.msra.mxu0 %v1322
    %1424 = vmatprep.subr.bf16.mxu0 %v1327
    %1425 = vmatpush1.bf16.msra.mxu0 %v1326
    %1426 = vmatprep.mubr.bf16.mxu0 %v945
    %1427 = vmatmul.mubr.bf16.gmra.mrb[0].mxu0 %v944
    %v1428 = vpop.f32.mrb[0].mxu0
    %v1429 = vadd.f32 0.0, %v1428
    %v1430 = vpop.f32.mrb[0].mxu0
    %v1431 = vadd.f32 0.0, %v1430
    %v1432 = vpop.f32.mrb[0].mxu0
    %v1433 = vpop.f32.mrb[0].mxu0
    %1434 = vdwg.mxu0
    %1435 = vmatprep.subr.bf16.mxu0 %v1269
    %1436 = vmatpush1.bf16.msra.mxu0 %v1268
    %1437 = vmatprep.subr.bf16.mxu0 %v1273
    %1438 = vmatpush1.bf16.msra.mxu0 %v1272
    %1439 = vmatprep.subr.bf16.mxu0 %v1277
    %1440 = vmatpush1.bf16.msra.mxu0 %v1276
    %1441 = vmatprep.subr.bf16.mxu0 %v1281
    %1442 = vmatpush1.bf16.msra.mxu0 %v1280
    %1443 = vmatprep.subr.bf16.mxu0 %v1285
    %1444 = vmatpush1.bf16.msra.mxu0 %v1284
    %1445 = vmatprep.subr.bf16.mxu0 %v1289
    %1446 = vmatpush1.bf16.msra.mxu0 %v1288
    %1447 = vmatprep.subr.bf16.mxu0 %v1293
    %1448 = vmatpush1.bf16.msra.mxu0 %v1292
    %1449 = vmatprep.subr.bf16.mxu0 %v1297
    %1450 = vmatpush1.bf16.msra.mxu0 %v1296
    %1451 = vmatprep.subr.bf16.mxu0 %v1301
    %1452 = vmatpush1.bf16.msra.mxu0 %v1300
    %1453 = vmatprep.subr.bf16.mxu0 %v1305
    %1454 = vmatpush1.bf16.msra.mxu0 %v1304
    %1455 = vmatprep.subr.bf16.mxu0 %v1309
    %1456 = vmatpush1.bf16.msra.mxu0 %v1308
    %1457 = vmatprep.subr.bf16.mxu0 %v1313
    %1458 = vmatpush1.bf16.msra.mxu0 %v1312
    %1459 = vmatprep.subr.bf16.mxu0 %v1317
    %1460 = vmatpush1.bf16.msra.mxu0 %v1316
    %1461 = vmatprep.subr.bf16.mxu0 %v1321
    %1462 = vmatpush1.bf16.msra.mxu0 %v1320
    %1463 = vmatprep.subr.bf16.mxu0 %v1325
    %1464 = vmatpush1.bf16.msra.mxu0 %v1324
    %1465 = vmatprep.subr.bf16.mxu0 %v1329
    %1466 = vmatpush1.bf16.msra.mxu0 %v1328
    %1467 = vmatprep.mubr.bf16.mxu0 %v945
    %1468 = vmatmul.mubr.bf16.gmra.mrb[0].mxu0 %v944
    %v1469 = vpop.f32.mrb[0].mxu0
    %v1470 = vadd.f32 0.0, %v1469
    %v1471 = vpop.f32.mrb[0].mxu0
    %v1472 = vadd.f32 0.0, %v1471
    %v1473 = vpop.f32.mrb[0].mxu0
    %v1474 = vpop.f32.mrb[0].mxu0
    %1475 = vdwg.mxu0
    %v1540 = vunpack.c.l.b16 %v946
    %v1541 = vunpack.c.h.b16 %v946
    %v1542 = vunpack.c.l.b16 %v947
    %v1543 = vunpack.c.h.b16 %v947
    %v1544 = vunpack.c.l.b16 %v948
    %v1545 = vunpack.c.h.b16 %v948
    %v1546 = vunpack.c.l.b16 %v949
    %v1547 = vunpack.c.h.b16 %v949
    %v1548 = vunpack.c.l.b16 %v950
    %v1549 = vunpack.c.h.b16 %v950
    %v1550 = vunpack.c.l.b16 %v951
    %v1551 = vunpack.c.h.b16 %v951
    %v1552 = vunpack.c.l.b16 %v952
    %v1553 = vunpack.c.h.b16 %v952
    %v1554 = vunpack.c.l.b16 %v953
    %v1555 = vunpack.c.h.b16 %v953
    %v1556 = vunpack.c.l.b16 %v954
    %v1557 = vunpack.c.h.b16 %v954
    %v1558 = vunpack.c.l.b16 %v955
    %v1559 = vunpack.c.h.b16 %v955
    %v1560 = vunpack.c.l.b16 %v956
    %v1561 = vunpack.c.h.b16 %v956
    %v1562 = vunpack.c.l.b16 %v957
    %v1563 = vunpack.c.h.b16 %v957
    %v1564 = vunpack.c.l.b16 %v958
    %v1565 = vunpack.c.h.b16 %v958
    %v1566 = vunpack.c.l.b16 %v959
    %v1567 = vunpack.c.h.b16 %v959
    %v1568 = vunpack.c.l.b16 %v960
    %v1569 = vunpack.c.h.b16 %v960
    %v1570 = vunpack.c.l.b16 %v961
    %v1571 = vunpack.c.h.b16 %v961
    %v1572 = vunpack.c.l.b16 %v962
    %v1573 = vunpack.c.h.b16 %v962
    %v1574 = vunpack.c.l.b16 %v963
    %v1575 = vunpack.c.h.b16 %v963
    %v1576 = vunpack.c.l.b16 %v964
    %v1577 = vunpack.c.h.b16 %v964
    %v1578 = vunpack.c.l.b16 %v965
    %v1579 = vunpack.c.h.b16 %v965
    %v1580 = vunpack.c.l.b16 %v966
    %v1581 = vunpack.c.h.b16 %v966
    %v1582 = vunpack.c.l.b16 %v967
    %v1583 = vunpack.c.h.b16 %v967
    %v1584 = vunpack.c.l.b16 %v968
    %v1585 = vunpack.c.h.b16 %v968
    %v1586 = vunpack.c.l.b16 %v969
    %v1587 = vunpack.c.h.b16 %v969
    %v1588 = vunpack.c.l.b16 %v970
    %v1589 = vunpack.c.h.b16 %v970
    %v1590 = vunpack.c.l.b16 %v971
    %v1591 = vunpack.c.h.b16 %v971
    %v1592 = vunpack.c.l.b16 %v972
    %v1593 = vunpack.c.h.b16 %v972
    %v1594 = vunpack.c.l.b16 %v973
    %v1595 = vunpack.c.h.b16 %v973
    %v1596 = vunpack.c.l.b16 %v974
    %v1597 = vunpack.c.h.b16 %v974
    %v1598 = vunpack.c.l.b16 %v975
    %v1599 = vunpack.c.h.b16 %v975
    %v1600 = vunpack.c.l.b16 %v976
    %v1601 = vunpack.c.h.b16 %v976
    %v1602 = vunpack.c.l.b16 %v977
    %v1603 = vunpack.c.h.b16 %v977
    %v1604 = vunpack.c.l.b16 %v978
    %v1605 = vunpack.c.h.b16 %v978
    %v1606 = vunpack.c.l.b16 %v979
    %v1607 = vunpack.c.h.b16 %v979
    %v1608 = vunpack.c.l.b16 %v980
    %v1609 = vunpack.c.h.b16 %v980
    %v1610 = vunpack.c.l.b16 %v981
    %v1611 = vunpack.c.h.b16 %v981
    %v1612 = vunpack.c.l.b16 %v982
    %v1613 = vunpack.c.h.b16 %v982
    %v1614 = vunpack.c.l.b16 %v983
    %v1615 = vunpack.c.h.b16 %v983
    %v1616 = vunpack.c.l.b16 %v984
    %v1617 = vunpack.c.h.b16 %v984
    %v1618 = vunpack.c.l.b16 %v985
    %v1619 = vunpack.c.h.b16 %v985
    %v1620 = vunpack.c.l.b16 %v986
    %v1621 = vunpack.c.h.b16 %v986
    %v1622 = vunpack.c.l.b16 %v987
    %v1623 = vunpack.c.h.b16 %v987
    %v1624 = vunpack.c.l.b16 %v988
    %v1625 = vunpack.c.h.b16 %v988
    %v1626 = vunpack.c.l.b16 %v989
    %v1627 = vunpack.c.h.b16 %v989
    %v1628 = vunpack.c.l.b16 %v990
    %v1629 = vunpack.c.h.b16 %v990
    %v1630 = vunpack.c.l.b16 %v991
    %v1631 = vunpack.c.h.b16 %v991
    %v1632 = vunpack.c.l.b16 %v992
    %v1633 = vunpack.c.h.b16 %v992
    %v1634 = vunpack.c.l.b16 %v993
    %v1635 = vunpack.c.h.b16 %v993
    %v1636 = vunpack.c.l.b16 %v994
    %v1637 = vunpack.c.h.b16 %v994
    %v1638 = vunpack.c.l.b16 %v995
    %v1639 = vunpack.c.h.b16 %v995
    %v1640 = vunpack.c.l.b16 %v996
    %v1641 = vunpack.c.h.b16 %v996
    %v1642 = vunpack.c.l.b16 %v997
    %v1643 = vunpack.c.h.b16 %v997
    %v1644 = vunpack.c.l.b16 %v998
    %v1645 = vunpack.c.h.b16 %v998
    %v1646 = vunpack.c.l.b16 %v999
    %v1647 = vunpack.c.h.b16 %v999
    %v1648 = vunpack.c.l.b16 %v1000
    %v1649 = vunpack.c.h.b16 %v1000
    %v1650 = vunpack.c.l.b16 %v1001
    %v1651 = vunpack.c.h.b16 %v1001
    %v1652 = vunpack.c.l.b16 %v1002
    %v1653 = vunpack.c.h.b16 %v1002
    %v1654 = vunpack.c.l.b16 %v1003
    %v1655 = vunpack.c.h.b16 %v1003
    %v1656 = vunpack.c.l.b16 %v1004
    %v1657 = vunpack.c.h.b16 %v1004
    %v1658 = vunpack.c.l.b16 %v1005
    %v1659 = vunpack.c.h.b16 %v1005
    %v1660 = vunpack.c.l.b16 %v1006
    %v1661 = vunpack.c.h.b16 %v1006
    %v1662 = vunpack.c.l.b16 %v1007
    %v1663 = vunpack.c.h.b16 %v1007
    %v1664 = vunpack.c.l.b16 %v1008
    %v1665 = vunpack.c.h.b16 %v1008
    %v1666 = vunpack.c.l.b16 %v1009
    %v1667 = vunpack.c.h.b16 %v1009
    %v1668 = vpack.c.b16 %v1544, %v1540
    %v1669 = vpack.c.b16 %v1545, %v1541
    %v1670 = vpack.c.b16 %v1546, %v1542
    %v1671 = vpack.c.b16 %v1547, %v1543
    %v1672 = vpack.c.b16 %v1552, %v1548
    %v1673 = vpack.c.b16 %v1553, %v1549
    %v1674 = vpack.c.b16 %v1554, %v1550
    %v1675 = vpack.c.b16 %v1555, %v1551
    %v1676 = vpack.c.b16 %v1560, %v1556
    %v1677 = vpack.c.b16 %v1561, %v1557
    %v1678 = vpack.c.b16 %v1562, %v1558
    %v1679 = vpack.c.b16 %v1563, %v1559
    %v1680 = vpack.c.b16 %v1568, %v1564
    %v1681 = vpack.c.b16 %v1569, %v1565
    %v1682 = vpack.c.b16 %v1570, %v1566
    %v1683 = vpack.c.b16 %v1571, %v1567
    %v1684 = vpack.c.b16 %v1576, %v1572
    %v1685 = vpack.c.b16 %v1577, %v1573
    %v1686 = vpack.c.b16 %v1578, %v1574
    %v1687 = vpack.c.b16 %v1579, %v1575
    %v1688 = vpack.c.b16 %v1584, %v1580
    %v1689 = vpack.c.b16 %v1585, %v1581
    %v1690 = vpack.c.b16 %v1586, %v1582
    %v1691 = vpack.c.b16 %v1587, %v1583
    %v1692 = vpack.c.b16 %v1592, %v1588
    %v1693 = vpack.c.b16 %v1593, %v1589
    %v1694 = vpack.c.b16 %v1594, %v1590
    %v1695 = vpack.c.b16 %v1595, %v1591
    %v1696 = vpack.c.b16 %v1600, %v1596
    %v1697 = vpack.c.b16 %v1601, %v1597
    %v1698 = vpack.c.b16 %v1602, %v1598
    %v1699 = vpack.c.b16 %v1603, %v1599
    %v1700 = vpack.c.b16 %v1608, %v1604
    %v1701 = vpack.c.b16 %v1609, %v1605
    %v1702 = vpack.c.b16 %v1610, %v1606
    %v1703 = vpack.c.b16 %v1611, %v1607
    %v1704 = vpack.c.b16 %v1616, %v1612
    %v1705 = vpack.c.b16 %v1617, %v1613
    %v1706 = vpack.c.b16 %v1618, %v1614
    %v1707 = vpack.c.b16 %v1619, %v1615
    %v1708 = vpack.c.b16 %v1624, %v1620
    %v1709 = vpack.c.b16 %v1625, %v1621
    %v1710 = vpack.c.b16 %v1626, %v1622
    %v1711 = vpack.c.b16 %v1627, %v1623
    %v1712 = vpack.c.b16 %v1632, %v1628
    %v1713 = vpack.c.b16 %v1633, %v1629
    %v1714 = vpack.c.b16 %v1634, %v1630
    %v1715 = vpack.c.b16 %v1635, %v1631
    %v1716 = vpack.c.b16 %v1640, %v1636
    %v1717 = vpack.c.b16 %v1641, %v1637
    %v1718 = vpack.c.b16 %v1642, %v1638
    %v1719 = vpack.c.b16 %v1643, %v1639
    %v1720 = vpack.c.b16 %v1648, %v1644
    %v1721 = vpack.c.b16 %v1649, %v1645
    %v1722 = vpack.c.b16 %v1650, %v1646
    %v1723 = vpack.c.b16 %v1651, %v1647
    %v1724 = vpack.c.b16 %v1656, %v1652
    %v1725 = vpack.c.b16 %v1657, %v1653
    %v1726 = vpack.c.b16 %v1658, %v1654
    %v1727 = vpack.c.b16 %v1659, %v1655
    %v1728 = vpack.c.b16 %v1664, %v1660
    %v1729 = vpack.c.b16 %v1665, %v1661
    %v1730 = vpack.c.b16 %v1666, %v1662
    %v1731 = vpack.c.b16 %v1667, %v1663
    %1796 = vmatprep.subr.bf16.mxu0 %v1669
    %1797 = vmatpush1.bf16.msra.mxu0 %v1668
    %1798 = vmatprep.subr.bf16.mxu0 %v1673
    %1799 = vmatpush1.bf16.msra.mxu0 %v1672
    %1800 = vmatprep.subr.bf16.mxu0 %v1677
    %1801 = vmatpush1.bf16.msra.mxu0 %v1676
    %1802 = vmatprep.subr.bf16.mxu0 %v1681
    %1803 = vmatpush1.bf16.msra.mxu0 %v1680
    %1804 = vmatprep.subr.bf16.mxu0 %v1685
    %1805 = vmatpush1.bf16.msra.mxu0 %v1684
    %1806 = vmatprep.subr.bf16.mxu0 %v1689
    %1807 = vmatpush1.bf16.msra.mxu0 %v1688
    %1808 = vmatprep.subr.bf16.mxu0 %v1693
    %1809 = vmatpush1.bf16.msra.mxu0 %v1692
    %1810 = vmatprep.subr.bf16.mxu0 %v1697
    %1811 = vmatpush1.bf16.msra.mxu0 %v1696
    %1812 = vmatprep.subr.bf16.mxu0 %v1701
    %1813 = vmatpush1.bf16.msra.mxu0 %v1700
    %1814 = vmatprep.subr.bf16.mxu0 %v1705
    %1815 = vmatpush1.bf16.msra.mxu0 %v1704
    %1816 = vmatprep.subr.bf16.mxu0 %v1709
    %1817 = vmatpush1.bf16.msra.mxu0 %v1708
    %1818 = vmatprep.subr.bf16.mxu0 %v1713
    %1819 = vmatpush1.bf16.msra.mxu0 %v1712
    %1820 = vmatprep.subr.bf16.mxu0 %v1717
    %1821 = vmatpush1.bf16.msra.mxu0 %v1716
    %1822 = vmatprep.subr.bf16.mxu0 %v1721
    %1823 = vmatpush1.bf16.msra.mxu0 %v1720
    %1824 = vmatprep.subr.bf16.mxu0 %v1725
    %1825 = vmatpush1.bf16.msra.mxu0 %v1724
    %1826 = vmatprep.subr.bf16.mxu0 %v1729
    %1827 = vmatpush1.bf16.msra.mxu0 %v1728
    %1828 = vmatprep.mubr.bf16.mxu0 %v668
    %1829 = vmatmul.mubr.bf16.gmra.mrb[0].mxu0 %v667
    %v1830 = vpop.f32.mrb[0].mxu0
    %v1831 = vadd.f32 %v1429, %v1830
    %v1832 = vpop.f32.mrb[0].mxu0
    %v1833 = vadd.f32 %v1431, %v1832
    %v1834 = vpop.f32.mrb[0].mxu0
    %v1835 = vpop.f32.mrb[0].mxu0
    %1836 = vdwg.mxu0
    %1837 = vmatprep.subr.bf16.mxu0 %v1671
    %1838 = vmatpush1.bf16.msra.mxu0 %v1670
    %1839 = vmatprep.subr.bf16.mxu0 %v1675
    %1840 = vmatpush1.bf16.msra.mxu0 %v1674
    %1841 = vmatprep.subr.bf16.mxu0 %v1679
    %1842 = vmatpush1.bf16.msra.mxu0 %v1678
    %1843 = vmatprep.subr.bf16.mxu0 %v1683
    %1844 = vmatpush1.bf16.msra.mxu0 %v1682
    %1845 = vmatprep.subr.bf16.mxu0 %v1687
    %1846 = vmatpush1.bf16.msra.mxu0 %v1686
    %1847 = vmatprep.subr.bf16.mxu0 %v1691
    %1848 = vmatpush1.bf16.msra.mxu0 %v1690
    %1849 = vmatprep.subr.bf16.mxu0 %v1695
    %1850 = vmatpush1.bf16.msra.mxu0 %v1694
    %1851 = vmatprep.subr.bf16.mxu0 %v1699
    %1852 = vmatpush1.bf16.msra.mxu0 %v1698
    %1853 = vmatprep.subr.bf16.mxu0 %v1703
    %1854 = vmatpush1.bf16.msra.mxu0 %v1702
    %1855 = vmatprep.subr.bf16.mxu0 %v1707
    %1856 = vmatpush1.bf16.msra.mxu0 %v1706
    %1857 = vmatprep.subr.bf16.mxu0 %v1711
    %1858 = vmatpush1.bf16.msra.mxu0 %v1710
    %1859 = vmatprep.subr.bf16.mxu0 %v1715
    %1860 = vmatpush1.bf16.msra.mxu0 %v1714
    %1861 = vmatprep.subr.bf16.mxu0 %v1719
    %1862 = vmatpush1.bf16.msra.mxu0 %v1718
    %1863 = vmatprep.subr.bf16.mxu0 %v1723
    %1864 = vmatpush1.bf16.msra.mxu0 %v1722
    %1865 = vmatprep.subr.bf16.mxu0 %v1727
    %1866 = vmatpush1.bf16.msra.mxu0 %v1726
    %1867 = vmatprep.subr.bf16.mxu0 %v1731
    %1868 = vmatpush1.bf16.msra.mxu0 %v1730
    %1869 = vmatprep.mubr.bf16.mxu0 %v668
    %1870 = vmatmul.mubr.bf16.gmra.mrb[0].mxu0 %v667
    %v1871 = vpop.f32.mrb[0].mxu0
    %v1872 = vadd.f32 %v1470, %v1871
    %v1873 = vpop.f32.mrb[0].mxu0
    %v1874 = vadd.f32 %v1472, %v1873
    %v1875 = vpop.f32.mrb[0].mxu0
    %v1876 = vpop.f32.mrb[0].mxu0
    %1877 = vdwg.mxu0
    %v1878 = vpack.c.bf16 %v1831, %v1831
    %v1879 = vpack.c.bf16 %v1833, %v1833
    %v1880 = vpack.c.bf16 %v1872, %v1872
    %v1881 = vpack.c.bf16 %v1874, %v1874
    %v1882 = vld [vmem:[%s9] sm:$0xf]
    %v1885 = vunpack.c.l.s4 1966171168
    %v1886 = vunpack.c.0.s8 %v1885
    %v1887 = vlaneseq
    %v1888 = vshrl.u32 %v1887, 7
    %v1889 = vsub.s32 %v1886, %v1888
    %v1890 = vrot.slane %v1882, %v1889
    %v1891 = vcombine.high %v1890, %v1890
    %v1893 = vunpack.c.l.s4 1966171168
    %v1894 = vunpack.c.0.s8 %v1893
    %v1895 = vlaneseq
    %v1896 = vshrl.u32 %v1895, 7
    %v1897 = vsub.s32 %v1894, %v1896
    %v1898 = vrot.slane %v1890, %v1897
    %v1900 = vunpack.c.l.s4 1966171168
    %v1901 = vunpack.c.0.s8 %v1900
    %v1902 = vlaneseq
    %v1903 = vshrl.u32 %v1902, 7
    %v1904 = vsub.s32 %v1901, %v1903
    %v1905 = vrot.slane %v1891, %v1904
    %v1906 = vcombine.high %v1898, %v1898
    %v1907 = vcombine.high %v1905, %v1905
    %v1909 = vpack.i.b16 %v1898, %v1898
    %v1911 = vlaneseq
    %v1912 = vshrl.u32 %v1911, 7
    %v1913 = vsub.s32 0, %v1912
    %v1914 = vrot.slane %v1909, %v1913
    %v1916 = vpack.i.b16 %v1905, %v1905
    %v1918 = vlaneseq
    %v1919 = vshrl.u32 %v1918, 7
    %v1920 = vsub.s32 0, %v1919
    %v1921 = vrot.slane %v1916, %v1920
    %v1923 = vpack.i.b16 %v1906, %v1906
    %v1925 = vlaneseq
    %v1926 = vshrl.u32 %v1925, 7
    %v1927 = vsub.s32 0, %v1926
    %v1928 = vrot.slane %v1923, %v1927
    %v1930 = vpack.i.b16 %v1907, %v1907
    %v1932 = vlaneseq
    %v1933 = vshrl.u32 %v1932, 7
    %v1934 = vsub.s32 0, %v1933
    %v1935 = vrot.slane %v1930, %v1934
    %v1936 = vadd.bf16 %v1878, %v1914
    %v1937 = vadd.bf16 %v1879, %v1921
    %v1938 = vadd.bf16 %v1880, %v1928
    %v1939 = vadd.bf16 %v1881, %v1935
    %v1940 = vmax.bf16 %v1936, 0
    %v1941 = vmax.bf16 %v1937, 0
    %v1942 = vmax.bf16 %v1938, 0
    %v1943 = vmax.bf16 %v1939, 0
    %v1944 = vld [vmem:[#allocation13] sm:$0xff]
    %v1945 = vld [vmem:[#allocation13 + $0x8] sm:$0xff]
    %v1946 = vld [vmem:[#allocation13 + $0x10] sm:$0xff]
    %v1947 = vld [vmem:[#allocation13 + $0x18] sm:$0xff]
    %v1948 = vld [vmem:[#allocation13 + $0x20] sm:$0xff]
    %v1949 = vld [vmem:[#allocation13 + $0x28] sm:$0xff]
    %v1950 = vld [vmem:[#allocation13 + $0x30] sm:$0xff]
    %v1951 = vld [vmem:[#allocation13 + $0x38] sm:$0xff]
    %v1952 = vld [vmem:[#allocation13 + $0x40] sm:$0xff]
    %v1953 = vld [vmem:[#allocation13 + $0x48] sm:$0xff]
    %v1954 = vld [vmem:[#allocation13 + $0x50] sm:$0xff]
    %v1955 = vld [vmem:[#allocation13 + $0x58] sm:$0xff]
    %v1956 = vld [vmem:[#allocation13 + $0x60] sm:$0xff]
    %v1957 = vld [vmem:[#allocation13 + $0x68] sm:$0xff]
    %v1958 = vld [vmem:[#allocation13 + $0x70] sm:$0xff]
    %v1959 = vld [vmem:[#allocation13 + $0x78] sm:$0xff]
    %v1960 = vld [vmem:[#allocation13 + $0x80] sm:$0xff]
    %v1961 = vld [vmem:[#allocation13 + $0x88] sm:$0xff]
    %v1962 = vld [vmem:[#allocation13 + $0x90] sm:$0xff]
    %v1963 = vld [vmem:[#allocation13 + $0x98] sm:$0xff]
    %v1964 = vld [vmem:[#allocation13 + $0xa0] sm:$0xff]
    %v1965 = vld [vmem:[#allocation13 + $0xa8] sm:$0xff]
    %v1966 = vld [vmem:[#allocation13 + $0xb0] sm:$0xff]
    %v1967 = vld [vmem:[#allocation13 + $0xb8] sm:$0xff]
    %v1968 = vld [vmem:[#allocation13 + $0xc0] sm:$0xff]
    %v1969 = vld [vmem:[#allocation13 + $0xc8] sm:$0xff]
    %v1970 = vld [vmem:[#allocation13 + $0xd0] sm:$0xff]
    %v1971 = vld [vmem:[#allocation13 + $0xd8] sm:$0xff]
    %v1972 = vld [vmem:[#allocation13 + $0xe0] sm:$0xff]
    %v1973 = vld [vmem:[#allocation13 + $0xe8] sm:$0xff]
    %v1974 = vld [vmem:[#allocation13 + $0xf0] sm:$0xff]
    %v1975 = vld [vmem:[#allocation13 + $0xf8] sm:$0xff]
    %v1976 = vld [vmem:[#allocation13 + $0x100] sm:$0xff]
    %v1977 = vld [vmem:[#allocation13 + $0x108] sm:$0xff]
    %v1978 = vld [vmem:[#allocation13 + $0x110] sm:$0xff]
    %v1979 = vld [vmem:[#allocation13 + $0x118] sm:$0xff]
    %v1980 = vld [vmem:[#allocation13 + $0x120] sm:$0xff]
    %v1981 = vld [vmem:[#allocation13 + $0x128] sm:$0xff]
    %v1982 = vld [vmem:[#allocation13 + $0x130] sm:$0xff]
    %v1983 = vld [vmem:[#allocation13 + $0x138] sm:$0xff]
    %v1984 = vld [vmem:[#allocation13 + $0x140] sm:$0xff]
    %v1985 = vld [vmem:[#allocation13 + $0x148] sm:$0xff]
    %v1986 = vld [vmem:[#allocation13 + $0x150] sm:$0xff]
    %v1987 = vld [vmem:[#allocation13 + $0x158] sm:$0xff]
    %v1988 = vld [vmem:[#allocation13 + $0x160] sm:$0xff]
    %v1989 = vld [vmem:[#allocation13 + $0x168] sm:$0xff]
    %v1990 = vld [vmem:[#allocation13 + $0x170] sm:$0xff]
    %v1991 = vld [vmem:[#allocation13 + $0x178] sm:$0xff]
    %v1992 = vld [vmem:[#allocation13 + $0x180] sm:$0xff]
    %v1993 = vld [vmem:[#allocation13 + $0x188] sm:$0xff]
    %v1994 = vld [vmem:[#allocation13 + $0x190] sm:$0xff]
    %v1995 = vld [vmem:[#allocation13 + $0x198] sm:$0xff]
    %v1996 = vld [vmem:[#allocation13 + $0x1a0] sm:$0xff]
    %v1997 = vld [vmem:[#allocation13 + $0x1a8] sm:$0xff]
    %v1998 = vld [vmem:[#allocation13 + $0x1b0] sm:$0xff]
    %v1999 = vld [vmem:[#allocation13 + $0x1b8] sm:$0xff]
    %v2000 = vld [vmem:[#allocation13 + $0x1c0] sm:$0xff]
    %v2001 = vld [vmem:[#allocation13 + $0x1c8] sm:$0xff]
    %v2002 = vld [vmem:[#allocation13 + $0x1d0] sm:$0xff]
    %v2003 = vld [vmem:[#allocation13 + $0x1d8] sm:$0xff]
    %v2004 = vld [vmem:[#allocation13 + $0x1e0] sm:$0xff]
    %v2005 = vld [vmem:[#allocation13 + $0x1e8] sm:$0xff]
    %v2006 = vld [vmem:[#allocation13 + $0x1f0] sm:$0xff]
    %v2007 = vld [vmem:[#allocation13 + $0x1f8] sm:$0xff]
    %v2008 = vld [vmem:[%s11] sm:$0x3]
    %v2010 = vlaneseq
    %v2011 = vshrl.u32 %v2010, 7
    %v2012 = vsub.s32 0, %v2011
    %v2013 = vrot.slane %v2008, %v2012
    %v2014 = vlaneseq
    %v2015 = vshrl.u32 %v2014, 7
    %v2016 = vsub.s32 1, %v2015
    %v2017 = vrot.slane %v2008, %v2016
    %v2084 = vunpack.c.l.b16 %v1944
    %v2085 = vunpack.c.h.b16 %v1944
    %v2086 = vunpack.c.l.b16 %v1945
    %v2087 = vunpack.c.h.b16 %v1945
    %v2088 = vunpack.c.l.b16 %v1946
    %v2089 = vunpack.c.h.b16 %v1946
    %v2090 = vunpack.c.l.b16 %v1947
    %v2091 = vunpack.c.h.b16 %v1947
    %v2092 = vunpack.c.l.b16 %v1948
    %v2093 = vunpack.c.h.b16 %v1948
    %v2094 = vunpack.c.l.b16 %v1949
    %v2095 = vunpack.c.h.b16 %v1949
    %v2096 = vunpack.c.l.b16 %v1950
    %v2097 = vunpack.c.h.b16 %v1950
    %v2098 = vunpack.c.l.b16 %v1951
    %v2099 = vunpack.c.h.b16 %v1951
    %v2100 = vunpack.c.l.b16 %v1952
    %v2101 = vunpack.c.h.b16 %v1952
    %v2102 = vunpack.c.l.b16 %v1953
    %v2103 = vunpack.c.h.b16 %v1953
    %v2104 = vunpack.c.l.b16 %v1954
    %v2105 = vunpack.c.h.b16 %v1954
    %v2106 = vunpack.c.l.b16 %v1955
    %v2107 = vunpack.c.h.b16 %v1955
    %v2108 = vunpack.c.l.b16 %v1956
    %v2109 = vunpack.c.h.b16 %v1956
    %v2110 = vunpack.c.l.b16 %v1957
    %v2111 = vunpack.c.h.b16 %v1957
    %v2112 = vunpack.c.l.b16 %v1958
    %v2113 = vunpack.c.h.b16 %v1958
    %v2114 = vunpack.c.l.b16 %v1959
    %v2115 = vunpack.c.h.b16 %v1959
    %v2116 = vunpack.c.l.b16 %v1960
    %v2117 = vunpack.c.h.b16 %v1960
    %v2118 = vunpack.c.l.b16 %v1961
    %v2119 = vunpack.c.h.b16 %v1961
    %v2120 = vunpack.c.l.b16 %v1962
    %v2121 = vunpack.c.h.b16 %v1962
    %v2122 = vunpack.c.l.b16 %v1963
    %v2123 = vunpack.c.h.b16 %v1963
    %v2124 = vunpack.c.l.b16 %v1964
    %v2125 = vunpack.c.h.b16 %v1964
    %v2126 = vunpack.c.l.b16 %v1965
    %v2127 = vunpack.c.h.b16 %v1965
    %v2128 = vunpack.c.l.b16 %v1966
    %v2129 = vunpack.c.h.b16 %v1966
    %v2130 = vunpack.c.l.b16 %v1967
    %v2131 = vunpack.c.h.b16 %v1967
    %v2132 = vunpack.c.l.b16 %v1968
    %v2133 = vunpack.c.h.b16 %v1968
    %v2134 = vunpack.c.l.b16 %v1969
    %v2135 = vunpack.c.h.b16 %v1969
    %v2136 = vunpack.c.l.b16 %v1970
    %v2137 = vunpack.c.h.b16 %v1970
    %v2138 = vunpack.c.l.b16 %v1971
    %v2139 = vunpack.c.h.b16 %v1971
    %v2140 = vunpack.c.l.b16 %v1972
    %v2141 = vunpack.c.h.b16 %v1972
    %v2142 = vunpack.c.l.b16 %v1973
    %v2143 = vunpack.c.h.b16 %v1973
    %v2144 = vunpack.c.l.b16 %v1974
    %v2145 = vunpack.c.h.b16 %v1974
    %v2146 = vunpack.c.l.b16 %v1975
    %v2147 = vunpack.c.h.b16 %v1975
    %v2148 = vunpack.c.l.b16 %v1976
    %v2149 = vunpack.c.h.b16 %v1976
    %v2150 = vunpack.c.l.b16 %v1977
    %v2151 = vunpack.c.h.b16 %v1977
    %v2152 = vunpack.c.l.b16 %v1978
    %v2153 = vunpack.c.h.b16 %v1978
    %v2154 = vunpack.c.l.b16 %v1979
    %v2155 = vunpack.c.h.b16 %v1979
    %v2156 = vunpack.c.l.b16 %v1980
    %v2157 = vunpack.c.h.b16 %v1980
    %v2158 = vunpack.c.l.b16 %v1981
    %v2159 = vunpack.c.h.b16 %v1981
    %v2160 = vunpack.c.l.b16 %v1982
    %v2161 = vunpack.c.h.b16 %v1982
    %v2162 = vunpack.c.l.b16 %v1983
    %v2163 = vunpack.c.h.b16 %v1983
    %v2164 = vunpack.c.l.b16 %v1984
    %v2165 = vunpack.c.h.b16 %v1984
    %v2166 = vunpack.c.l.b16 %v1985
    %v2167 = vunpack.c.h.b16 %v1985
    %v2168 = vunpack.c.l.b16 %v1986
    %v2169 = vunpack.c.h.b16 %v1986
    %v2170 = vunpack.c.l.b16 %v1987
    %v2171 = vunpack.c.h.b16 %v1987
    %v2172 = vunpack.c.l.b16 %v1988
    %v2173 = vunpack.c.h.b16 %v1988
    %v2174 = vunpack.c.l.b16 %v1989
    %v2175 = vunpack.c.h.b16 %v1989
    %v2176 = vunpack.c.l.b16 %v1990
    %v2177 = vunpack.c.h.b16 %v1990
    %v2178 = vunpack.c.l.b16 %v1991
    %v2179 = vunpack.c.h.b16 %v1991
    %v2180 = vunpack.c.l.b16 %v1992
    %v2181 = vunpack.c.h.b16 %v1992
    %v2182 = vunpack.c.l.b16 %v1993
    %v2183 = vunpack.c.h.b16 %v1993
    %v2184 = vunpack.c.l.b16 %v1994
    %v2185 = vunpack.c.h.b16 %v1994
    %v2186 = vunpack.c.l.b16 %v1995
    %v2187 = vunpack.c.h.b16 %v1995
    %v2188 = vunpack.c.l.b16 %v1996
    %v2189 = vunpack.c.h.b16 %v1996
    %v2190 = vunpack.c.l.b16 %v1997
    %v2191 = vunpack.c.h.b16 %v1997
    %v2192 = vunpack.c.l.b16 %v1998
    %v2193 = vunpack.c.h.b16 %v1998
    %v2194 = vunpack.c.l.b16 %v1999
    %v2195 = vunpack.c.h.b16 %v1999
    %v2196 = vunpack.c.l.b16 %v2000
    %v2197 = vunpack.c.h.b16 %v2000
    %v2198 = vunpack.c.l.b16 %v2001
    %v2199 = vunpack.c.h.b16 %v2001
    %v2200 = vunpack.c.l.b16 %v2002
    %v2201 = vunpack.c.h.b16 %v2002
    %v2202 = vunpack.c.l.b16 %v2003
    %v2203 = vunpack.c.h.b16 %v2003
    %v2204 = vunpack.c.l.b16 %v2004
    %v2205 = vunpack.c.h.b16 %v2004
    %v2206 = vunpack.c.l.b16 %v2005
    %v2207 = vunpack.c.h.b16 %v2005
    %v2208 = vunpack.c.l.b16 %v2006
    %v2209 = vunpack.c.h.b16 %v2006
    %v2210 = vunpack.c.l.b16 %v2007
    %v2211 = vunpack.c.h.b16 %v2007
    %v2212 = vpack.c.b16 %v2086, %v2084
    %v2213 = vpack.c.b16 %v2087, %v2085
    %v2214 = vpack.c.b16 %v2090, %v2088
    %v2215 = vpack.c.b16 %v2091, %v2089
    %v2216 = vpack.c.b16 %v2094, %v2092
    %v2217 = vpack.c.b16 %v2095, %v2093
    %v2218 = vpack.c.b16 %v2098, %v2096
    %v2219 = vpack.c.b16 %v2099, %v2097
    %v2220 = vpack.c.b16 %v2102, %v2100
    %v2221 = vpack.c.b16 %v2103, %v2101
    %v2222 = vpack.c.b16 %v2106, %v2104
    %v2223 = vpack.c.b16 %v2107, %v2105
    %v2224 = vpack.c.b16 %v2110, %v2108
    %v2225 = vpack.c.b16 %v2111, %v2109
    %v2226 = vpack.c.b16 %v2114, %v2112
    %v2227 = vpack.c.b16 %v2115, %v2113
    %v2228 = vpack.c.b16 %v2118, %v2116
    %v2229 = vpack.c.b16 %v2119, %v2117
    %v2230 = vpack.c.b16 %v2122, %v2120
    %v2231 = vpack.c.b16 %v2123, %v2121
    %v2232 = vpack.c.b16 %v2126, %v2124
    %v2233 = vpack.c.b16 %v2127, %v2125
    %v2234 = vpack.c.b16 %v2130, %v2128
    %v2235 = vpack.c.b16 %v2131, %v2129
    %v2236 = vpack.c.b16 %v2134, %v2132
    %v2237 = vpack.c.b16 %v2135, %v2133
    %v2238 = vpack.c.b16 %v2138, %v2136
    %v2239 = vpack.c.b16 %v2139, %v2137
    %v2240 = vpack.c.b16 %v2142, %v2140
    %v2241 = vpack.c.b16 %v2143, %v2141
    %v2242 = vpack.c.b16 %v2146, %v2144
    %v2243 = vpack.c.b16 %v2147, %v2145
    %v2244 = vpack.c.b16 %v2150, %v2148
    %v2245 = vpack.c.b16 %v2151, %v2149
    %v2246 = vpack.c.b16 %v2154, %v2152
    %v2247 = vpack.c.b16 %v2155, %v2153
    %v2248 = vpack.c.b16 %v2158, %v2156
    %v2249 = vpack.c.b16 %v2159, %v2157
    %v2250 = vpack.c.b16 %v2162, %v2160
    %v2251 = vpack.c.b16 %v2163, %v2161
    %v2252 = vpack.c.b16 %v2166, %v2164
    %v2253 = vpack.c.b16 %v2167, %v2165
    %v2254 = vpack.c.b16 %v2170, %v2168
    %v2255 = vpack.c.b16 %v2171, %v2169
    %v2256 = vpack.c.b16 %v2174, %v2172
    %v2257 = vpack.c.b16 %v2175, %v2173
    %v2258 = vpack.c.b16 %v2178, %v2176
    %v2259 = vpack.c.b16 %v2179, %v2177
    %v2260 = vpack.c.b16 %v2182, %v2180
    %v2261 = vpack.c.b16 %v2183, %v2181
    %v2262 = vpack.c.b16 %v2186, %v2184
    %v2263 = vpack.c.b16 %v2187, %v2185
    %v2264 = vpack.c.b16 %v2190, %v2188
    %v2265 = vpack.c.b16 %v2191, %v2189
    %v2266 = vpack.c.b16 %v2194, %v2192
    %v2267 = vpack.c.b16 %v2195, %v2193
    %v2268 = vpack.c.b16 %v2198, %v2196
    %v2269 = vpack.c.b16 %v2199, %v2197
    %v2270 = vpack.c.b16 %v2202, %v2200
    %v2271 = vpack.c.b16 %v2203, %v2201
    %v2272 = vpack.c.b16 %v2206, %v2204
    %v2273 = vpack.c.b16 %v2207, %v2205
    %v2274 = vpack.c.b16 %v2210, %v2208
    %v2275 = vpack.c.b16 %v2211, %v2209
    %2340 = vmatprep.subr.bf16.mxu0 %v2213
    %2341 = vmatpush1.bf16.msra.mxu0 %v2212
    %2342 = vmatprep.subr.bf16.mxu0 %v2215
    %2343 = vmatpush1.bf16.msra.mxu0 %v2214
    %2344 = vmatprep.subr.bf16.mxu0 %v2217
    %2345 = vmatpush1.bf16.msra.mxu0 %v2216
    %2346 = vmatprep.subr.bf16.mxu0 %v2219
    %2347 = vmatpush1.bf16.msra.mxu0 %v2218
    %2348 = vmatprep.subr.bf16.mxu0 %v2221
    %2349 = vmatpush1.bf16.msra.mxu0 %v2220
    %2350 = vmatprep.subr.bf16.mxu0 %v2223
    %2351 = vmatpush1.bf16.msra.mxu0 %v2222
    %2352 = vmatprep.subr.bf16.mxu0 %v2225
    %2353 = vmatpush1.bf16.msra.mxu0 %v2224
    %2354 = vmatprep.subr.bf16.mxu0 %v2227
    %2355 = vmatpush1.bf16.msra.mxu0 %v2226
    %2356 = vmatprep.subr.bf16.mxu0 %v2229
    %2357 = vmatpush1.bf16.msra.mxu0 %v2228
    %2358 = vmatprep.subr.bf16.mxu0 %v2231
    %2359 = vmatpush1.bf16.msra.mxu0 %v2230
    %2360 = vmatprep.subr.bf16.mxu0 %v2233
    %2361 = vmatpush1.bf16.msra.mxu0 %v2232
    %2362 = vmatprep.subr.bf16.mxu0 %v2235
    %2363 = vmatpush1.bf16.msra.mxu0 %v2234
    %2364 = vmatprep.subr.bf16.mxu0 %v2237
    %2365 = vmatpush1.bf16.msra.mxu0 %v2236
    %2366 = vmatprep.subr.bf16.mxu0 %v2239
    %2367 = vmatpush1.bf16.msra.mxu0 %v2238
    %2368 = vmatprep.subr.bf16.mxu0 %v2241
    %2369 = vmatpush1.bf16.msra.mxu0 %v2240
    %2370 = vmatprep.subr.bf16.mxu0 %v2243
    %2371 = vmatpush1.bf16.msra.mxu0 %v2242
    %2372 = vmatprep.mubr.bf16.mxu0 %v1941
    %2373 = vmatmul.mubr.bf16.gmra.mrb[0].mxu0 %v1940
    %v2374 = vpop.f32.mrb[0].mxu0
    %v2375 = vadd.f32 %v2013, %v2374
    %v2376 = vpop.f32.mrb[0].mxu0
    %v2377 = vadd.f32 %v2017, %v2376
    %v2378 = vpop.f32.mrb[0].mxu0
    %v2379 = vpop.f32.mrb[0].mxu0
    %2380 = vdwg.mxu0
    %2381 = vmatprep.subr.bf16.mxu0 %v2245
    %2382 = vmatpush1.bf16.msra.mxu0 %v2244
    %2383 = vmatprep.subr.bf16.mxu0 %v2247
    %2384 = vmatpush1.bf16.msra.mxu0 %v2246
    %2385 = vmatprep.subr.bf16.mxu0 %v2249
    %2386 = vmatpush1.bf16.msra.mxu0 %v2248
    %2387 = vmatprep.subr.bf16.mxu0 %v2251
    %2388 = vmatpush1.bf16.msra.mxu0 %v2250
    %2389 = vmatprep.subr.bf16.mxu0 %v2253
    %2390 = vmatpush1.bf16.msra.mxu0 %v2252
    %2391 = vmatprep.subr.bf16.mxu0 %v2255
    %2392 = vmatpush1.bf16.msra.mxu0 %v2254
    %2393 = vmatprep.subr.bf16.mxu0 %v2257
    %2394 = vmatpush1.bf16.msra.mxu0 %v2256
    %2395 = vmatprep.subr.bf16.mxu0 %v2259
    %2396 = vmatpush1.bf16.msra.mxu0 %v2258
    %2397 = vmatprep.subr.bf16.mxu0 %v2261
    %2398 = vmatpush1.bf16.msra.mxu0 %v2260
    %2399 = vmatprep.subr.bf16.mxu0 %v2263
    %2400 = vmatpush1.bf16.msra.mxu0 %v2262
    %2401 = vmatprep.subr.bf16.mxu0 %v2265
    %2402 = vmatpush1.bf16.msra.mxu0 %v2264
    %2403 = vmatprep.subr.bf16.mxu0 %v2267
    %2404 = vmatpush1.bf16.msra.mxu0 %v2266
    %2405 = vmatprep.subr.bf16.mxu0 %v2269
    %2406 = vmatpush1.bf16.msra.mxu0 %v2268
    %2407 = vmatprep.subr.bf16.mxu0 %v2271
    %2408 = vmatpush1.bf16.msra.mxu0 %v2270
    %2409 = vmatprep.subr.bf16.mxu0 %v2273
    %2410 = vmatpush1.bf16.msra.mxu0 %v2272
    %2411 = vmatprep.subr.bf16.mxu0 %v2275
    %2412 = vmatpush1.bf16.msra.mxu0 %v2274
    %2413 = vmatprep.mubr.bf16.mxu0 %v1943
    %2414 = vmatmul.mubr.bf16.gmra.mrb[0].mxu0 %v1942
    %v2415 = vpop.f32.mrb[0].mxu0
    %v2416 = vadd.f32 %v2375, %v2415
    %v2417 = vpop.f32.mrb[0].mxu0
    %v2418 = vadd.f32 %v2377, %v2417
    %v2419 = vpop.f32.mrb[0].mxu0
    %v2420 = vpop.f32.mrb[0].mxu0
    %2421 = vdwg.mxu0
    %v2422 = vmax.f32 %v2416, 0.0
    %v2423 = vmax.f32 %v2418, 0.0
    %v2424 = vld [vmem:[%s12] sm:$0x3]
    %v2425 = vunpack.c.l.bf16 %v2424
    %v2427 = vlaneseq
    %v2428 = vshrl.u32 %v2427, 7
    %v2429 = vsub.s32 0, %v2428
    %v2430 = vrot.slane %v2425, %v2429
    %v2431 = vlaneseq
    %v2432 = vshrl.u32 %v2431, 7
    %v2433 = vsub.s32 2, %v2432
    %v2434 = vrot.slane %v2425, %v2433
    %v2437 = vlaneseq
    %v2438 = vshrl.u32 %v2437, 7
    %v2439 = vsub.s32 0, %v2438
    %v2440 = vrot.slane %v2430, %v2439
    %v2441 = vlaneseq
    %v2442 = vshrl.u32 %v2441, 7
    %v2443 = vsub.s32 0, %v2442
    %v2444 = vrot.slane %v2434, %v2443
    %v2445 = vmul.f32 %v2422, %v2440
    %v2446 = vmul.f32 %v2423, %v2444
    %v2447 = vadd.f32 %v2445, %v2446
    %2448 = vadd.xlane.f32.xlu0 %v2447
    %v2449 = vpop.xlane.xlu0 %2448
    %s2450 = sld [smem:[#allocation2]]
    %v2451 = vstv %s2450
    %v2452 = vadd.f32 %v2449, %v2451
    %vm2453 = vcmask 7168
    %2454 = vst.msk [vmem:[%s14] sm:$0xff] %vm2453, %v2452
    // Predicated region
    $region86: #{neural_network_forward.1} parent=1 // pred_check
      _
    $region87: #{neural_network_forward.1} parent=1 // pred_check_branch
      %2456 = sbr.rel (0) target = $region89
    $region88: #{neural_network_forward.1} parent=1 // pred_region
      _
    $region89: #{neural_network_forward.1} parent=1 // pred_fallthru
      _
    // Predicated region
    $region90: #{neural_network_forward.1} parent=1 // pred_check
      _
    $region91: #{neural_network_forward.1} parent=1 // pred_check_branch
      %2458 = sbr.rel (0) target = $region93
    $region92: #{neural_network_forward.1} parent=1 // pred_region
      _
    $region93: #{neural_network_forward.1} parent=1 // pred_fallthru
      _
    %2459 = vsyncpa [#allocation4], 1
    %2460 = vsyncpa [#allocation6], 1
    %2461 = vsyncpa [#allocation9], 1
    %2462 = vsyncpa [#allocation12], 1

</llo_original>
